<compile_context>
chip_gen: v7x
topology: tpu7x:2x2x1
jax: 0.10.0
libtpu: 0.0.40
codegen_flags: <defaults>
</compile_context>

<pallas_src>
import functools

import numpy as np
import jax
import jax.numpy as jnp
from jax.experimental import pallas as pl
from jax.experimental.pallas import tpu as pltpu

_BN_EPS = 1e-5
_LANE = 128


def _round_up(v, m):
    return (v + m - 1) // m * m


def _vmem_limit_bytes():
    """~3/4 of physical VMEM (96 MiB on v5e/v6e, 48 MiB on v7x)."""
    try:
        cap = int(pltpu.get_tpu_info().vmem_capacity_bytes)
    except Exception:
        cap = 64 * 1024 * 1024
    return max(32 * 1024 * 1024, (cap * 3) // 4)


# ---------------------------------------------------------------------------
# Fused Pallas kernel: one grid step = one lane-pack of GCN copies, all layers
# ---------------------------------------------------------------------------
def _sage_pack_kernel(adj_ref, x_ref, w_ref, b_ref, gamma_ref, beta_ref,
                      o_ref, ah_ref, *, num_layers, n_real, p):
    """ah_ref is an (n_pad, 2P) scratch holding [A_norm @ H | H]; every layer
    is a single K=2P dot against pre-concatenated [[W_l]; [W_r]] weights."""
    cdt = ah_ref.dtype
    n_pad = ah_ref.shape[0]
    inv_n = 1.0 / float(n_real)

    need_mask = n_pad != n_real
    if need_mask:
        rows = jax.lax.broadcasted_iota(jnp.int32, (n_pad, 1), 0)
        rmask = (rows < n_real).astype(jnp.float32)   # (n_pad, 1), broadcast

    # Seed the root half with the (shared) input features.
    ah_ref[:, p:] = x_ref[...]

    for layer in range(num_layers):          # static unroll, num_layers small
        h_cur = ah_ref[:, p:]
        # Mean aggregation for every packed copy at once: A_norm @ H.
        ah_ref[:, :p] = jnp.dot(adj_ref[...], h_cur,
                                preferred_element_type=jnp.float32).astype(cdt)
        # Fused aggregated+root linear: [agg | h] @ [[W_l]; [W_r]]  (K = 2P).
        z = jnp.dot(ah_ref[...], w_ref[layer],
                    preferred_element_type=jnp.float32)

        if layer == num_layers - 1:
            # Output SAGEConv: bias only here (no BN / ReLU / dropout).
            o_ref[...] = (z + b_ref[...]).astype(o_ref.dtype)
        else:
            # BatchNorm1d (training-mode biased batch stats) fused with ReLU.
            # Hidden-layer conv bias is dropped (it cancels exactly under the
            # BN mean subtraction), so padded node rows of z are exactly zero
            # and the sums below need no masking (just divide by n_real).
            mean = jnp.sum(z, axis=0, keepdims=True) * inv_n
            msq = jnp.sum(z * z, axis=0, keepdims=True) * inv_n
            var = jnp.maximum(msq - mean * mean, 0.0)
            scale = gamma_ref[layer] * jax.lax.rsqrt(var + _BN_EPS)
            shift = beta_ref[layer] - mean * scale
            h_new = jnp.maximum(z * scale + shift, 0.0)
            if need_mask:
                h_new = h_new * rmask        # re-zero padded node rows
            # TODO(synk): dropout with p > 0 in training mode needs an RNG
            # matching torch semantics; with p = 0.0 it is an exact identity.
            ah_ref[:, p:] = h_new.astype(cdt)


# ---------------------------------------------------------------------------
# pallas_call wrapper
# ---------------------------------------------------------------------------
def _fused_sage_packs(adj_p, x_p, w_s, b_s, g_s, bt_s, *, num_layers, n_real,
                      out_dtype):
    num_packs, nl, twop, p = w_s.shape
    assert nl == num_layers and twop == 2 * p
    n_pad = adj_p.shape[0]
    cdt = x_p.dtype

    kernel = functools.partial(_sage_pack_kernel, num_layers=num_layers,
                               n_real=n_real, p=p)
    vmem_limit = _vmem_limit_bytes()

    # Resident-fit check: adjacency + x + [agg|h] scratch must fit next to the
    # (double-buffered) per-pack operands.
    # TODO(synk): beyond this ceiling switch to a row-tiled adjacency pipeline
    # (grid over node-row blocks with cross-block BN stat accumulators).
    csz = jnp.dtype(cdt).itemsize
    osz = jnp.dtype(out_dtype).itemsize
    resident = (n_pad * n_pad + 3 * n_pad * p) * csz
    per_step = (num_layers * 2 * p * p * csz
                + (1 + 2 * max(num_layers - 1, 1)) * p * 4
                + n_pad * p * osz)
    est = resident + (2 if num_packs > 1 else 1) * per_step
    if est > vmem_limit:
        raise ValueError(
            f"Resident working set ~{est / 2**20:.1f} MiB exceeds the VMEM "
            f"budget {vmem_limit / 2**20:.1f} MiB; reduce N or use a row-tiled "
            "adjacency pipeline.")

    def run(single_buffer_resident):
        res_kw = {}
        if single_buffer_resident:
            # adjacency / x have a constant block index -> a second pipeline
            # buffer is pure VMEM waste (decisive on v7x's 64 MiB VMEM).
            res_kw = dict(pipeline_mode=pl.Buffered(1))
        grid_spec = pltpu.PrefetchScalarGridSpec(
            num_scalar_prefetch=0,
            grid=(num_packs,),
            in_specs=[
                pl.BlockSpec((n_pad, n_pad), lambda g: (0, 0), **res_kw),
                pl.BlockSpec((n_pad, p), lambda g: (0, 0), **res_kw),
                # Per-pack stacked parameters (leading pack axis squeezed).
                pl.BlockSpec((None, num_layers, 2 * p, p),
                             lambda g: (g, 0, 0, 0)),
                pl.BlockSpec((None, 1, p), lambda g: (g, 0, 0)),
                pl.BlockSpec((None, num_layers - 1, 1, p),
                             lambda g: (g, 0, 0, 0)),
                pl.BlockSpec((None, num_layers - 1, 1, p),
                             lambda g: (g, 0, 0, 0)),
            ],
            out_specs=pl.BlockSpec((None, n_pad, p), lambda g: (g, 0, 0)),
            scratch_shapes=[pltpu.VMEM((n_pad, 2 * p), cdt)],   # [agg | h]
        )
        return pl.pallas_call(
            kernel,
            out_shape=jax.ShapeDtypeStruct((num_packs, n_pad, p), out_dtype),
            grid_spec=grid_spec,
            compiler_params=pltpu.CompilerParams(
                # Packs are fully independent (no cross-step scratch state),
                # so the pack axis can be sharded across v7x's two TensorCores.
                dimension_semantics=("parallel",),
                vmem_limit_bytes=int(vmem_limit),
            ),
        )(adj_p, x_p, w_s, b_s, g_s, bt_s)

    try:
        return run(True)
    except Exception:
        # pl.Buffered(1) not accepted by this JAX/Mosaic version -> fall back
        # to default double-buffering (correct, just uses more VMEM).
        return run(False)


# ---------------------------------------------------------------------------
# Parameters, packing, and the full forward (plain-JAX / numpy glue)
# ---------------------------------------------------------------------------
def init_sage_params(key, in_channels, hidden_channels, out_channels,
                     num_layers, num_gcns):
    """One SAGEConv = (W_l [Cin,Cout], W_r [Cin,Cout], b [1,Cout]); BN = (gamma, beta)."""
    params = []
    for _ in range(num_gcns):
        gcn = {"convs": [], "bns": []}
        dims = ([(in_channels, hidden_channels)]
                + [(hidden_channels, hidden_channels)] * (num_layers - 2)
                + [(hidden_channels, out_channels)])
        for li, (cin, cout) in enumerate(dims):
            key, k1, k2, k3 = jax.random.split(key, 4)
            bound = 1.0 / float(np.sqrt(cin))
            wl = jax.random.uniform(k1, (cin, cout), jnp.float32, -bound, bound)
            wr = jax.random.uniform(k2, (cin, cout), jnp.float32, -bound, bound)
            b = jax.random.uniform(k3, (1, cout), jnp.float32, -bound, bound)
            gcn["convs"].append((wl, wr, b))
            if li < num_layers - 1:  # BN only on hidden layers
                gcn["bns"].append((jnp.ones((1, cout), jnp.float32),
                                   jnp.zeros((1, cout), jnp.float32)))
        params.append(gcn)
    return params


def _pack_params(params, *, q, num_packs, p, num_layers, compute_dtype):
    """Lane-pack q GCN copies per pack; per layer the weights are concatenated
    as [[W_l]; [W_r]] (block-diagonal across copies) so the kernel does one
    K=2P dot per layer.  Hidden-layer conv biases are dropped on purpose
    (exactly cancelled by BatchNorm); only the final-layer bias is kept."""
    L = num_layers
    w = np.zeros((num_packs, L, 2 * p, p), np.float32)
    b = np.zeros((num_packs, 1, p), np.float32)
    gam = np.zeros((num_packs, max(L - 1, 1), 1, p), np.float32)
    bet = np.zeros_like(gam)
    for g, gcn in enumerate(params):
        pk, s = divmod(g, q)
        for li, (wl, wr, bias) in enumerate(gcn["convs"]):
            cin, cout = wl.shape
            r0 = 0 if li == 0 else s * cin     # layer-0 input is the shared x
            c0 = s * cout
            w[pk, li, r0:r0 + cin, c0:c0 + cout] = np.asarray(wl)
            w[pk, li, p + r0:p + r0 + cin, c0:c0 + cout] = np.asarray(wr)
            if li == L - 1:
                b[pk, 0, c0:c0 + cout] = np.asarray(bias)[0]
        for li, (gamma, beta) in enumerate(gcn["bns"]):
            cout = gamma.shape[-1]
            c0 = s * cout
            gam[pk, li, 0, c0:c0 + cout] = np.asarray(gamma)[0]
            bet[pk, li, 0, c0:c0 + cout] = np.asarray(beta)[0]
    return (jnp.asarray(w, compute_dtype), jnp.asarray(b, jnp.float32),
            jnp.asarray(gam, jnp.float32), jnp.asarray(bet, jnp.float32))


def build_mean_adjacency(edge_index, num_nodes):
    """Dense row-normalized adjacency A[i, j] = mult(j->i)/deg_in(i)."""
    src, dst = edge_index[0], edge_index[1]
    adj = jnp.zeros((num_nodes, num_nodes), jnp.float32)
    adj = adj.at[dst, src].add(1.0)
    deg = jnp.sum(adj, axis=1, keepdims=True)
    return adj / jnp.where(deg > 0, deg, 1.0)


def sage_forward(params, x, adj, *, compute_dtype=jnp.bfloat16):
    """Returns list of y_hats (one [N, out_channels] f32 array per GCN copy)."""
    n, in_c = x.shape
    num_gcns = len(params)
    num_layers = len(params[0]["convs"])
    assert num_layers >= 2
    hid = params[0]["convs"][0][0].shape[1]
    out_c = params[0]["convs"][-1][0].shape[1]

    # How many GCN copies fit side-by-side in the 128-lane channel axis.
    cmax = max(hid, out_c)
    q = max(1, min(num_gcns, _LANE // cmax)) if cmax <= _LANE else 1
    num_packs = -(-num_gcns // q)
    p = _round_up(max(in_c, q * hid, q * out_c), _LANE)  # lane-dense channels
    n_pad = _round_up(n, 32)   # unmasked sublane tiles for f32/bf16/int8

    # NOTE: adjacency carried in compute_dtype (f32 accumulation in the MXU);
    # keep it f32 here if the 1/deg weights need tighter numerics.
    x_p = jnp.zeros((n_pad, p), compute_dtype).at[:n, :in_c].set(
        x.astype(compute_dtype))
    adj_p = jnp.zeros((n_pad, n_pad), compute_dtype).at[:n, :n].set(
        adj.astype(compute_dtype))

    w_s, b_s, g_s, bt_s = _pack_params(params, q=q, num_packs=num_packs, p=p,
                                       num_layers=num_layers,
                                       compute_dtype=compute_dtype)
    out = _fused_sage_packs(adj_p, x_p, w_s, b_s, g_s, bt_s,
                            num_layers=num_layers, n_real=n,
                            out_dtype=compute_dtype)
    y_hats = []
    for g in range(num_gcns):
        pk, s = divmod(g, q)
        y_hats.append(out[pk, :n, s * out_c:(s + 1) * out_c]
                      .astype(jnp.float32))
    return y_hats


def sage_reference(params, x, adj):
    """Pure-JAX f32 reference (high-precision dots) mirroring the torch module."""
    dot = functools.partial(jnp.dot, precision=jax.lax.Precision.HIGHEST)
    y_hats = []
    for gcn in params:
        h = x
        n_layers = len(gcn["convs"])
        for li in range(n_layers - 1):
            wl, wr, b = gcn["convs"][li]
            gamma, beta = gcn["bns"][li]
            h = dot(dot(adj, h), wl) + dot(h, wr) + b
            mean = jnp.mean(h, axis=0, keepdims=True)
            var = jnp.mean((h - mean) ** 2, axis=0, keepdims=True)
            h = (h - mean) * jax.lax.rsqrt(var + _BN_EPS) * gamma + beta
            h = jnp.maximum(h, 0.0)
        wl, wr, b = gcn["convs"][-1]
        y_hats.append(dot(dot(adj, h), wl) + dot(h, wr) + b)
    return y_hats


if __name__ == "__main__":
    # Small, module-consistent shapes.  num_nodes is deliberately not a
    # sublane multiple so the node-padding / masked-BN path is exercised, and
    # hidden=32 < 128 so two GCN copies lane-pack into one grid step.
    num_nodes = 30
    in_channels = 16
    hidden_channels = 32
    out_channels = 8
    num_layers = 3
    num_gcns = 2
    num_edges = 96
    dropout = 0.0  # identity in forward

    key = jax.random.PRNGKey(0)
    kx, ke_src, ke_dst, kp = jax.random.split(key, 4)

    x = jax.random.normal(kx, (num_nodes, in_channels), jnp.float32)
    edge_index = jnp.stack([
        jax.random.randint(ke_src, (num_edges,), 0, num_nodes, jnp.int32),
        jax.random.randint(ke_dst, (num_edges,), 0, num_nodes, jnp.int32),
    ])  # [2, E], row 0 = src, row 1 = dst (PyG convention)

    params = init_sage_params(kp, in_channels, hidden_channels, out_channels,
                              num_layers, num_gcns)
    adj = build_mean_adjacency(edge_index, num_nodes)

    # 1) Correctness: f32 kernel vs pure-JAX reference.
    y_f32 = jax.block_until_ready(
        sage_forward(params, x, adj, compute_dtype=jnp.float32))
    y_ref = sage_reference(params, x, adj)
    assert len(y_f32) == num_gcns
    for a, b in zip(y_f32, y_ref):
        assert a.shape == (num_nodes, out_channels)
        assert bool(jnp.all(jnp.isfinite(a)))
        assert bool(jnp.allclose(a, b, atol=2e-2, rtol=2e-2))

    # 2) Performance path: bf16 operands, f32 accumulation and BN epilogue.
    y_bf16 = jax.block_until_ready(
        sage_forward(params, x, adj, compute_dtype=jnp.bfloat16))
    assert len(y_bf16) == num_gcns
    for a in y_bf16:
        assert a.shape == (num_nodes, out_channels)
        assert bool(jnp.all(jnp.isfinite(a)))

    print("KERNEL_OK")
</pallas_src>

<mosaic_0001>
module attributes {stable_mosaic.version = 11 : i64} {
  func.func @_sage_pack_kernel(%arg0: i32, %arg1: memref<32x32xf32, #tpu.memory_space<vmem>>, %arg2: memref<32x128xf32, #tpu.memory_space<vmem>>, %arg3: memref<1x3x256x128xf32, #tpu.memory_space<vmem>>, %arg4: memref<1x1x128xf32, #tpu.memory_space<vmem>>, %arg5: memref<1x2x1x128xf32, #tpu.memory_space<vmem>>, %arg6: memref<1x2x1x128xf32, #tpu.memory_space<vmem>>, %arg7: memref<1x32x128xf32, #tpu.memory_space<vmem>>, %arg8: memref<32x256xf32, #tpu.memory_space<vmem>>) attributes {dimension_semantics = [#tpu.dimension_semantics<parallel>], iteration_bounds = array<i64: 1>, scalar_prefetch = 0 : i64, scratch_operands = 1 : i64, tpu.core_type = #tpu.core_type<tc>, window_params = [{pipeline_mode = #tpu.pipeline_mode<synchronous>, transform_indices = @transform_0, window_bounds = array<i64: 32, 32>}, {pipeline_mode = #tpu.pipeline_mode<synchronous>, transform_indices = @transform_1, window_bounds = array<i64: 32, 128>}, {transform_indices = @transform_2, window_bounds = array<i64: 1, 3, 256, 128>}, {transform_indices = @transform_3, window_bounds = array<i64: 1, 1, 128>}, {transform_indices = @transform_4, window_bounds = array<i64: 1, 2, 1, 128>}, {transform_indices = @transform_5, window_bounds = array<i64: 1, 2, 1, 128>}, {transform_indices = @transform_6, window_bounds = array<i64: 1, 32, 128>}]} {
    %0 = tpu.iota {dimensions = array<i32: 0>} : vector<32x1xi32>
    %c30_i32 = arith.constant 30 : i32
    %1 = vector.broadcast %c30_i32 : i32 to vector<32x1xi32>
    %2 = arith.cmpi slt, %0, %1 : vector<32x1xi32>
    %3 = arith.extui %2 : vector<32x1xi1> to vector<32x1xi32>
    %4 = arith.sitofp %3 : vector<32x1xi32> to vector<32x1xf32>
    %c0 = arith.constant 0 : index
    %c0_0 = arith.constant 0 : index
    %5 = vector.load %arg2[%c0, %c0_0] : memref<32x128xf32, #tpu.memory_space<vmem>>, vector<32x128xf32>
    %c0_1 = arith.constant 0 : index
    %c128 = arith.constant 128 : index
    %6 = vector.load %arg8[%c0_1, %c128] : memref<32x256xf32, #tpu.memory_space<vmem>>, vector<32x128xf32>
    tpu.vector_store %arg8[%c0_1, %c128], %5 {strides = array<i32>} : memref<32x256xf32, #tpu.memory_space<vmem>>, vector<32x128xf32>,
    %c0_2 = arith.constant 0 : index
    %c128_3 = arith.constant 128 : index
    %7 = vector.load %arg8[%c0_2, %c128_3] : memref<32x256xf32, #tpu.memory_space<vmem>>, vector<32x128xf32>
    %c0_4 = arith.constant 0 : index
    %c0_5 = arith.constant 0 : index
    %8 = vector.load %arg1[%c0_4, %c0_5] : memref<32x32xf32, #tpu.memory_space<vmem>>, vector<32x32xf32>
    %cst = arith.constant dense<0.000000e+00> : vector<32x128xf32>
    %9 = tpu.matmul %8, %7, %cst {dimension_numbers = #tpu.dot_dimension_numbers<[1], [0], [0], [1], [0, 0, 1, 1], [], []>} : vector<32x32xf32>, vector<32x128xf32>, vector<32x128xf32> -> vector<32x128xf32>
    %c0_6 = arith.constant 0 : index
    %c0_7 = arith.constant 0 : index
    %10 = vector.load %arg8[%c0_6, %c0_7] : memref<32x256xf32, #tpu.memory_space<vmem>>, vector<32x128xf32>
    tpu.vector_store %arg8[%c0_6, %c0_7], %9 {strides = array<i32>} : memref<32x256xf32, #tpu.memory_space<vmem>>, vector<32x128xf32>,
    %c0_8 = arith.constant 0 : index
    %c0_9 = arith.constant 0 : index
    %11 = vector.load %arg8[%c0_8, %c0_9] : memref<32x256xf32, #tpu.memory_space<vmem>>, vector<32x256xf32>
    %c0_10 = arith.constant 0 : index
    %c0_11 = arith.constant 0 : index
    %c0_12 = arith.constant 0 : index
    %c0_13 = arith.constant 0 : index
    %12 = vector.load %arg3[%c0_10, %c0_11, %c0_12, %c0_13] : memref<1x3x256x128xf32, #tpu.memory_space<vmem>>, vector<1x1x256x128xf32>
    %13 = vector.shape_cast %12 : vector<1x1x256x128xf32> to vector<256x128xf32>
    %cst_14 = arith.constant dense<0.000000e+00> : vector<32x128xf32>
    %14 = tpu.matmul %11, %13, %cst_14 {dimension_numbers = #tpu.dot_dimension_numbers<[1], [0], [0], [1], [0, 0, 1, 1], [], []>} : vector<32x256xf32>, vector<256x128xf32>, vector<32x128xf32> -> vector<32x128xf32>
    %cst_15 = arith.constant dense<0.000000e+00> : vector<128xf32>
    %15 = vector.multi_reduction <add>, %14, %cst_15 [0] : vector<32x128xf32> to vector<128xf32>
    %16 = vector.shape_cast %15 : vector<128xf32> to vector<1x128xf32>
    %cst_16 = arith.constant 0.0333333351 : f32
    %17 = vector.broadcast %cst_16 : f32 to vector<1x128xf32>
    %18 = arith.mulf %16, %17 : vector<1x128xf32>
    %19 = arith.mulf %14, %14 : vector<32x128xf32>
    %cst_17 = arith.constant dense<0.000000e+00> : vector<128xf32>
    %20 = vector.multi_reduction <add>, %19, %cst_17 [0] : vector<32x128xf32> to vector<128xf32>
    %21 = vector.shape_cast %20 : vector<128xf32> to vector<1x128xf32>
    %cst_18 = arith.constant 0.0333333351 : f32
    %22 = vector.broadcast %cst_18 : f32 to vector<1x128xf32>
    %23 = arith.mulf %21, %22 : vector<1x128xf32>
    %24 = arith.mulf %18, %18 : vector<1x128xf32>
    %25 = arith.subf %23, %24 : vector<1x128xf32>
    %cst_19 = arith.constant 0.000000e+00 : f32
    %26 = vector.broadcast %cst_19 : f32 to vector<1x128xf32>
    %27 = arith.maximumf %25, %26 : vector<1x128xf32>
    %c0_20 = arith.constant 0 : index
    %c0_21 = arith.constant 0 : index
    %c0_22 = arith.constant 0 : index
    %c0_23 = arith.constant 0 : index
    %28 = vector.load %arg5[%c0_20, %c0_21, %c0_22, %c0_23] : memref<1x2x1x128xf32, #tpu.memory_space<vmem>>, vector<1x1x1x128xf32>
    %29 = vector.shape_cast %28 : vector<1x1x1x128xf32> to vector<1x128xf32>
    %cst_24 = arith.constant 9.99999974E-6 : f32
    %30 = vector.broadcast %cst_24 : f32 to vector<1x128xf32>
    %31 = arith.addf %27, %30 : vector<1x128xf32>
    %32 = math.rsqrt %31 : vector<1x128xf32>
    %33 = arith.mulf %29, %32 : vector<1x128xf32>
    %c0_25 = arith.constant 0 : index
    %c0_26 = arith.constant 0 : index
    %c0_27 = arith.constant 0 : index
    %c0_28 = arith.constant 0 : index
    %34 = vector.load %arg6[%c0_25, %c0_26, %c0_27, %c0_28] : memref<1x2x1x128xf32, #tpu.memory_space<vmem>>, vector<1x1x1x128xf32>
    %35 = vector.shape_cast %34 : vector<1x1x1x128xf32> to vector<1x128xf32>
    %36 = arith.mulf %18, %33 : vector<1x128xf32>
    %37 = arith.subf %35, %36 : vector<1x128xf32>
    %38 = vector.broadcast %33 : vector<1x128xf32> to vector<32x128xf32>
    %39 = arith.mulf %14, %38 : vector<32x128xf32>
    %40 = vector.broadcast %37 : vector<1x128xf32> to vector<32x128xf32>
    %41 = arith.addf %39, %40 : vector<32x128xf32>
    %cst_29 = arith.constant 0.000000e+00 : f32
    %42 = vector.broadcast %cst_29 : f32 to vector<32x128xf32>
    %43 = arith.maximumf %41, %42 : vector<32x128xf32>
    %44 = vector.broadcast %4 : vector<32x1xf32> to vector<32x128xf32>
    %45 = arith.mulf %43, %44 : vector<32x128xf32>
    %c0_30 = arith.constant 0 : index
    %c128_31 = arith.constant 128 : index
    %46 = vector.load %arg8[%c0_30, %c128_31] : memref<32x256xf32, #tpu.memory_space<vmem>>, vector<32x128xf32>
    tpu.vector_store %arg8[%c0_30, %c128_31], %45 {strides = array<i32>} : memref<32x256xf32, #tpu.memory_space<vmem>>, vector<32x128xf32>,
    %c0_32 = arith.constant 0 : index
    %c128_33 = arith.constant 128 : index
    %47 = vector.load %arg8[%c0_32, %c128_33] : memref<32x256xf32, #tpu.memory_space<vmem>>, vector<32x128xf32>
    %c0_34 = arith.constant 0 : index
    %c0_35 = arith.constant 0 : index
    %48 = vector.load %arg1[%c0_34, %c0_35] : memref<32x32xf32, #tpu.memory_space<vmem>>, vector<32x32xf32>
    %cst_36 = arith.constant dense<0.000000e+00> : vector<32x128xf32>
    %49 = tpu.matmul %48, %47, %cst_36 {dimension_numbers = #tpu.dot_dimension_numbers<[1], [0], [0], [1], [0, 0, 1, 1], [], []>} : vector<32x32xf32>, vector<32x128xf32>, vector<32x128xf32> -> vector<32x128xf32>
    %c0_37 = arith.constant 0 : index
    %c0_38 = arith.constant 0 : index
    %50 = vector.load %arg8[%c0_37, %c0_38] : memref<32x256xf32, #tpu.memory_space<vmem>>, vector<32x128xf32>
    tpu.vector_store %arg8[%c0_37, %c0_38], %49 {strides = array<i32>} : memref<32x256xf32, #tpu.memory_space<vmem>>, vector<32x128xf32>,
    %c0_39 = arith.constant 0 : index
    %c0_40 = arith.constant 0 : index
    %51 = vector.load %arg8[%c0_39, %c0_40] : memref<32x256xf32, #tpu.memory_space<vmem>>, vector<32x256xf32>
    %c0_41 = arith.constant 0 : index
    %c1 = arith.constant 1 : index
    %c0_42 = arith.constant 0 : index
    %c0_43 = arith.constant 0 : index
    %52 = vector.load %arg3[%c0_41, %c1, %c0_42, %c0_43] : memref<1x3x256x128xf32, #tpu.memory_space<vmem>>, vector<1x1x256x128xf32>
    %53 = vector.shape_cast %52 : vector<1x1x256x128xf32> to vector<256x128xf32>
    %cst_44 = arith.constant dense<0.000000e+00> : vector<32x128xf32>
    %54 = tpu.matmul %51, %53, %cst_44 {dimension_numbers = #tpu.dot_dimension_numbers<[1], [0], [0], [1], [0, 0, 1, 1], [], []>} : vector<32x256xf32>, vector<256x128xf32>, vector<32x128xf32> -> vector<32x128xf32>
    %cst_45 = arith.constant dense<0.000000e+00> : vector<128xf32>
    %55 = vector.multi_reduction <add>, %54, %cst_45 [0] : vector<32x128xf32> to vector<128xf32>
    %56 = vector.shape_cast %55 : vector<128xf32> to vector<1x128xf32>
    %cst_46 = arith.constant 0.0333333351 : f32
    %57 = vector.broadcast %cst_46 : f32 to vector<1x128xf32>
    %58 = arith.mulf %56, %57 : vector<1x128xf32>
    %59 = arith.mulf %54, %54 : vector<32x128xf32>
    %cst_47 = arith.constant dense<0.000000e+00> : vector<128xf32>
    %60 = vector.multi_reduction <add>, %59, %cst_47 [0] : vector<32x128xf32> to vector<128xf32>
    %61 = vector.shape_cast %60 : vector<128xf32> to vector<1x128xf32>
    %cst_48 = arith.constant 0.0333333351 : f32
    %62 = vector.broadcast %cst_48 : f32 to vector<1x128xf32>
    %63 = arith.mulf %61, %62 : vector<1x128xf32>
    %64 = arith.mulf %58, %58 : vector<1x128xf32>
    %65 = arith.subf %63, %64 : vector<1x128xf32>
    %cst_49 = arith.constant 0.000000e+00 : f32
    %66 = vector.broadcast %cst_49 : f32 to vector<1x128xf32>
    %67 = arith.maximumf %65, %66 : vector<1x128xf32>
    %c0_50 = arith.constant 0 : index
    %c1_51 = arith.constant 1 : index
    %c0_52 = arith.constant 0 : index
    %c0_53 = arith.constant 0 : index
    %68 = vector.load %arg5[%c0_50, %c1_51, %c0_52, %c0_53] : memref<1x2x1x128xf32, #tpu.memory_space<vmem>>, vector<1x1x1x128xf32>
    %69 = vector.shape_cast %68 : vector<1x1x1x128xf32> to vector<1x128xf32>
    %cst_54 = arith.constant 9.99999974E-6 : f32
    %70 = vector.broadcast %cst_54 : f32 to vector<1x128xf32>
    %71 = arith.addf %67, %70 : vector<1x128xf32>
    %72 = math.rsqrt %71 : vector<1x128xf32>
    %73 = arith.mulf %69, %72 : vector<1x128xf32>
    %c0_55 = arith.constant 0 : index
    %c1_56 = arith.constant 1 : index
    %c0_57 = arith.constant 0 : index
    %c0_58 = arith.constant 0 : index
    %74 = vector.load %arg6[%c0_55, %c1_56, %c0_57, %c0_58] : memref<1x2x1x128xf32, #tpu.memory_space<vmem>>, vector<1x1x1x128xf32>
    %75 = vector.shape_cast %74 : vector<1x1x1x128xf32> to vector<1x128xf32>
    %76 = arith.mulf %58, %73 : vector<1x128xf32>
    %77 = arith.subf %75, %76 : vector<1x128xf32>
    %78 = vector.broadcast %73 : vector<1x128xf32> to vector<32x128xf32>
    %79 = arith.mulf %54, %78 : vector<32x128xf32>
    %80 = vector.broadcast %77 : vector<1x128xf32> to vector<32x128xf32>
    %81 = arith.addf %79, %80 : vector<32x128xf32>
    %cst_59 = arith.constant 0.000000e+00 : f32
    %82 = vector.broadcast %cst_59 : f32 to vector<32x128xf32>
    %83 = arith.maximumf %81, %82 : vector<32x128xf32>
    %84 = vector.broadcast %4 : vector<32x1xf32> to vector<32x128xf32>
    %85 = arith.mulf %83, %84 : vector<32x128xf32>
    %c0_60 = arith.constant 0 : index
    %c128_61 = arith.constant 128 : index
    %86 = vector.load %arg8[%c0_60, %c128_61] : memref<32x256xf32, #tpu.memory_space<vmem>>, vector<32x128xf32>
    tpu.vector_store %arg8[%c0_60, %c128_61], %85 {strides = array<i32>} : memref<32x256xf32, #tpu.memory_space<vmem>>, vector<32x128xf32>,
    %c0_62 = arith.constant 0 : index
    %c128_63 = arith.constant 128 : index
    %87 = vector.load %arg8[%c0_62, %c128_63] : memref<32x256xf32, #tpu.memory_space<vmem>>, vector<32x128xf32>
    %c0_64 = arith.constant 0 : index
    %c0_65 = arith.constant 0 : index
    %88 = vector.load %arg1[%c0_64, %c0_65] : memref<32x32xf32, #tpu.memory_space<vmem>>, vector<32x32xf32>
    %cst_66 = arith.constant dense<0.000000e+00> : vector<32x128xf32>
    %89 = tpu.matmul %88, %87, %cst_66 {dimension_numbers = #tpu.dot_dimension_numbers<[1], [0], [0], [1], [0, 0, 1, 1], [], []>} : vector<32x32xf32>, vector<32x128xf32>, vector<32x128xf32> -> vector<32x128xf32>
    %c0_67 = arith.constant 0 : index
    %c0_68 = arith.constant 0 : index
    %90 = vector.load %arg8[%c0_67, %c0_68] : memref<32x256xf32, #tpu.memory_space<vmem>>, vector<32x128xf32>
    tpu.vector_store %arg8[%c0_67, %c0_68], %89 {strides = array<i32>} : memref<32x256xf32, #tpu.memory_space<vmem>>, vector<32x128xf32>,
    %c0_69 = arith.constant 0 : index
    %c0_70 = arith.constant 0 : index
    %91 = vector.load %arg8[%c0_69, %c0_70] : memref<32x256xf32, #tpu.memory_space<vmem>>, vector<32x256xf32>
    %c0_71 = arith.constant 0 : index
    %c2 = arith.constant 2 : index
    %c0_72 = arith.constant 0 : index
    %c0_73 = arith.constant 0 : index
    %92 = vector.load %arg3[%c0_71, %c2, %c0_72, %c0_73] : memref<1x3x256x128xf32, #tpu.memory_space<vmem>>, vector<1x1x256x128xf32>
    %93 = vector.shape_cast %92 : vector<1x1x256x128xf32> to vector<256x128xf32>
    %cst_74 = arith.constant dense<0.000000e+00> : vector<32x128xf32>
    %94 = tpu.matmul %91, %93, %cst_74 {dimension_numbers = #tpu.dot_dimension_numbers<[1], [0], [0], [1], [0, 0, 1, 1], [], []>} : vector<32x256xf32>, vector<256x128xf32>, vector<32x128xf32> -> vector<32x128xf32>
    %c0_75 = arith.constant 0 : index
    %c0_76 = arith.constant 0 : index
    %c0_77 = arith.constant 0 : index
    %95 = vector.load %arg4[%c0_75, %c0_76, %c0_77] : memref<1x1x128xf32, #tpu.memory_space<vmem>>, vector<1x1x128xf32>
    %96 = vector.shape_cast %95 : vector<1x1x128xf32> to vector<1x128xf32>
    %97 = vector.broadcast %96 : vector<1x128xf32> to vector<32x128xf32>
    %98 = arith.addf %94, %97 : vector<32x128xf32>
    %c0_78 = arith.constant 0 : index
    %c0_79 = arith.constant 0 : index
    %c0_80 = arith.constant 0 : index
    %99 = vector.load %arg7[%c0_78, %c0_79, %c0_80] : memref<1x32x128xf32, #tpu.memory_space<vmem>>, vector<1x32x128xf32>
    %100 = vector.shape_cast %99 : vector<1x32x128xf32> to vector<32x128xf32>
    %101 = vector.shape_cast %98 : vector<32x128xf32> to vector<1x32x128xf32>
    tpu.vector_store %arg7[%c0_78, %c0_79, %c0_80], %101 {strides = array<i32>} : memref<1x32x128xf32, #tpu.memory_space<vmem>>, vector<1x32x128xf32>,
    return
  }
  func.func @transform_0(%arg0: i32) -> (i32, i32) {
    %c0_i32 = arith.constant 0 : i32
    %c0_i32_0 = arith.constant 0 : i32
    %c0_i32_1 = arith.constant 0 : i32
    return %c0_i32, %c0_i32_0 : i32, i32
  }
  func.func @transform_1(%arg0: i32) -> (i32, i32) {
    %c0_i32 = arith.constant 0 : i32
    %c0_i32_0 = arith.constant 0 : i32
    %c0_i32_1 = arith.constant 0 : i32
    return %c0_i32, %c0_i32_0 : i32, i32
  }
  func.func @transform_2(%arg0: i32) -> (i32, i32, i32, i32) {
    %c0_i32 = arith.constant 0 : i32
    %c0_i32_0 = arith.constant 0 : i32
    %c0_i32_1 = arith.constant 0 : i32
    %c0_i32_2 = arith.constant 0 : i32
    return %arg0, %c0_i32, %c0_i32_0, %c0_i32_1 : i32, i32, i32, i32
  }
  func.func @transform_3(%arg0: i32) -> (i32, i32, i32) {
    %c0_i32 = arith.constant 0 : i32
    %c0_i32_0 = arith.constant 0 : i32
    %c0_i32_1 = arith.constant 0 : i32
    return %arg0, %c0_i32, %c0_i32_0 : i32, i32, i32
  }
  func.func @transform_4(%arg0: i32) -> (i32, i32, i32, i32) {
    %c0_i32 = arith.constant 0 : i32
    %c0_i32_0 = arith.constant 0 : i32
    %c0_i32_1 = arith.constant 0 : i32
    %c0_i32_2 = arith.constant 0 : i32
    return %arg0, %c0_i32, %c0_i32_0, %c0_i32_1 : i32, i32, i32, i32
  }
  func.func @transform_5(%arg0: i32) -> (i32, i32, i32, i32) {
    %c0_i32 = arith.constant 0 : i32
    %c0_i32_0 = arith.constant 0 : i32
    %c0_i32_1 = arith.constant 0 : i32
    %c0_i32_2 = arith.constant 0 : i32
    return %arg0, %c0_i32, %c0_i32_0, %c0_i32_1 : i32, i32, i32, i32
  }
  func.func @transform_6(%arg0: i32) -> (i32, i32, i32) {
    %c0_i32 = arith.constant 0 : i32
    %c0_i32_0 = arith.constant 0 : i32
    %c0_i32_1 = arith.constant 0 : i32
    return %arg0, %c0_i32, %c0_i32_0 : i32, i32, i32
  }
}

module attributes {stable_mosaic.version = 11 : i64} {
  func.func @_sage_pack_kernel(%arg0: i32, %arg1: memref<32x32xf32, #tpu.memory_space<vmem>>, %arg2: memref<32x128xf32, #tpu.memory_space<vmem>>, %arg3: memref<1x3x256x128xf32, #tpu.memory_space<vmem>>, %arg4: memref<1x1x128xf32, #tpu.memory_space<vmem>>, %arg5: memref<1x2x1x128xf32, #tpu.memory_space<vmem>>, %arg6: memref<1x2x1x128xf32, #tpu.memory_space<vmem>>, %arg7: memref<1x32x128xf32, #tpu.memory_space<vmem>>, %arg8: memref<32x256xf32, #tpu.memory_space<vmem>>) attributes {dimension_semantics = [#tpu.dimension_semantics<parallel>], iteration_bounds = array<i64: 1>, scalar_prefetch = 0 : i64, scratch_operands = 1 : i64, tpu.core_type = #tpu.core_type<tc>, window_params = [{pipeline_mode = #tpu.pipeline_mode<synchronous>, transform_indices = @transform_0, window_bounds = array<i64: 32, 32>}, {pipeline_mode = #tpu.pipeline_mode<synchronous>, transform_indices = @transform_1, window_bounds = array<i64: 32, 128>}, {transform_indices = @transform_2, window_bounds = array<i64: 1, 3, 256, 128>}, {transform_indices = @transform_3, window_bounds = array<i64: 1, 1, 128>}, {transform_indices = @transform_4, window_bounds = array<i64: 1, 2, 1, 128>}, {transform_indices = @transform_5, window_bounds = array<i64: 1, 2, 1, 128>}, {transform_indices = @transform_6, window_bounds = array<i64: 1, 32, 128>}]} {
    %0 = tpu.iota {dimensions = array<i32: 0>} : vector<32x1xi32>
    %c30_i32 = arith.constant 30 : i32
    %1 = vector.broadcast %c30_i32 : i32 to vector<32x1xi32>
    %2 = arith.cmpi slt, %0, %1 : vector<32x1xi32>
    %3 = arith.extui %2 : vector<32x1xi1> to vector<32x1xi32>
    %4 = arith.sitofp %3 : vector<32x1xi32> to vector<32x1xf32>
    %c0 = arith.constant 0 : index
    %c0_0 = arith.constant 0 : index
    %5 = vector.load %arg2[%c0, %c0_0] : memref<32x128xf32, #tpu.memory_space<vmem>>, vector<32x128xf32>
    %c0_1 = arith.constant 0 : index
    %c128 = arith.constant 128 : index
    %6 = vector.load %arg8[%c0_1, %c128] : memref<32x256xf32, #tpu.memory_space<vmem>>, vector<32x128xf32>
    tpu.vector_store %arg8[%c0_1, %c128], %5 {strides = array<i32>} : memref<32x256xf32, #tpu.memory_space<vmem>>, vector<32x128xf32>,
    %c0_2 = arith.constant 0 : index
    %c128_3 = arith.constant 128 : index
    %7 = vector.load %arg8[%c0_2, %c128_3] : memref<32x256xf32, #tpu.memory_space<vmem>>, vector<32x128xf32>
    %c0_4 = arith.constant 0 : index
    %c0_5 = arith.constant 0 : index
    %8 = vector.load %arg1[%c0_4, %c0_5] : memref<32x32xf32, #tpu.memory_space<vmem>>, vector<32x32xf32>
    %cst = arith.constant dense<0.000000e+00> : vector<32x128xf32>
    %9 = tpu.matmul %8, %7, %cst {dimension_numbers = #tpu.dot_dimension_numbers<[1], [0], [0], [1], [0, 0, 1, 1], [], []>} : vector<32x32xf32>, vector<32x128xf32>, vector<32x128xf32> -> vector<32x128xf32>
    %c0_6 = arith.constant 0 : index
    %c0_7 = arith.constant 0 : index
    %10 = vector.load %arg8[%c0_6, %c0_7] : memref<32x256xf32, #tpu.memory_space<vmem>>, vector<32x128xf32>
    tpu.vector_store %arg8[%c0_6, %c0_7], %9 {strides = array<i32>} : memref<32x256xf32, #tpu.memory_space<vmem>>, vector<32x128xf32>,
    %c0_8 = arith.constant 0 : index
    %c0_9 = arith.constant 0 : index
    %11 = vector.load %arg8[%c0_8, %c0_9] : memref<32x256xf32, #tpu.memory_space<vmem>>, vector<32x256xf32>
    %c0_10 = arith.constant 0 : index
    %c0_11 = arith.constant 0 : index
    %c0_12 = arith.constant 0 : index
    %c0_13 = arith.constant 0 : index
    %12 = vector.load %arg3[%c0_10, %c0_11, %c0_12, %c0_13] : memref<1x3x256x128xf32, #tpu.memory_space<vmem>>, vector<1x1x256x128xf32>
    %13 = vector.shape_cast %12 : vector<1x1x256x128xf32> to vector<256x128xf32>
    %cst_14 = arith.constant dense<0.000000e+00> : vector<32x128xf32>
    %14 = tpu.matmul %11, %13, %cst_14 {dimension_numbers = #tpu.dot_dimension_numbers<[1], [0], [0], [1], [0, 0, 1, 1], [], []>} : vector<32x256xf32>, vector<256x128xf32>, vector<32x128xf32> -> vector<32x128xf32>
    %cst_15 = arith.constant dense<0.000000e+00> : vector<128xf32>
    %15 = vector.multi_reduction <add>, %14, %cst_15 [0] : vector<32x128xf32> to vector<128xf32>
    %16 = vector.shape_cast %15 : vector<128xf32> to vector<1x128xf32>
    %cst_16 = arith.constant 0.0333333351 : f32
    %17 = vector.broadcast %cst_16 : f32 to vector<1x128xf32>
    %18 = arith.mulf %16, %17 : vector<1x128xf32>
    %19 = arith.mulf %14, %14 : vector<32x128xf32>
    %cst_17 = arith.constant dense<0.000000e+00> : vector<128xf32>
    %20 = vector.multi_reduction <add>, %19, %cst_17 [0] : vector<32x128xf32> to vector<128xf32>
    %21 = vector.shape_cast %20 : vector<128xf32> to vector<1x128xf32>
    %cst_18 = arith.constant 0.0333333351 : f32
    %22 = vector.broadcast %cst_18 : f32 to vector<1x128xf32>
    %23 = arith.mulf %21, %22 : vector<1x128xf32>
    %24 = arith.mulf %18, %18 : vector<1x128xf32>
    %25 = arith.subf %23, %24 : vector<1x128xf32>
    %cst_19 = arith.constant 0.000000e+00 : f32
    %26 = vector.broadcast %cst_19 : f32 to vector<1x128xf32>
    %27 = arith.maximumf %25, %26 : vector<1x128xf32>
    %c0_20 = arith.constant 0 : index
    %c0_21 = arith.constant 0 : index
    %c0_22 = arith.constant 0 : index
    %c0_23 = arith.constant 0 : index
    %28 = vector.load %arg5[%c0_20, %c0_21, %c0_22, %c0_23] : memref<1x2x1x128xf32, #tpu.memory_space<vmem>>, vector<1x1x1x128xf32>
    %29 = vector.shape_cast %28 : vector<1x1x1x128xf32> to vector<1x128xf32>
    %cst_24 = arith.constant 9.99999974E-6 : f32
    %30 = vector.broadcast %cst_24 : f32 to vector<1x128xf32>
    %31 = arith.addf %27, %30 : vector<1x128xf32>
    %32 = math.rsqrt %31 : vector<1x128xf32>
    %33 = arith.mulf %29, %32 : vector<1x128xf32>
    %c0_25 = arith.constant 0 : index
    %c0_26 = arith.constant 0 : index
    %c0_27 = arith.constant 0 : index
    %c0_28 = arith.constant 0 : index
    %34 = vector.load %arg6[%c0_25, %c0_26, %c0_27, %c0_28] : memref<1x2x1x128xf32, #tpu.memory_space<vmem>>, vector<1x1x1x128xf32>
    %35 = vector.shape_cast %34 : vector<1x1x1x128xf32> to vector<1x128xf32>
    %36 = arith.mulf %18, %33 : vector<1x128xf32>
    %37 = arith.subf %35, %36 : vector<1x128xf32>
    %38 = vector.broadcast %33 : vector<1x128xf32> to vector<32x128xf32>
    %39 = arith.mulf %14, %38 : vector<32x128xf32>
    %40 = vector.broadcast %37 : vector<1x128xf32> to vector<32x128xf32>
    %41 = arith.addf %39, %40 : vector<32x128xf32>
    %cst_29 = arith.constant 0.000000e+00 : f32
    %42 = vector.broadcast %cst_29 : f32 to vector<32x128xf32>
    %43 = arith.maximumf %41, %42 : vector<32x128xf32>
    %44 = vector.broadcast %4 : vector<32x1xf32> to vector<32x128xf32>
    %45 = arith.mulf %43, %44 : vector<32x128xf32>
    %c0_30 = arith.constant 0 : index
    %c128_31 = arith.constant 128 : index
    %46 = vector.load %arg8[%c0_30, %c128_31] : memref<32x256xf32, #tpu.memory_space<vmem>>, vector<32x128xf32>
    tpu.vector_store %arg8[%c0_30, %c128_31], %45 {strides = array<i32>} : memref<32x256xf32, #tpu.memory_space<vmem>>, vector<32x128xf32>,
    %c0_32 = arith.constant 0 : index
    %c128_33 = arith.constant 128 : index
    %47 = vector.load %arg8[%c0_32, %c128_33] : memref<32x256xf32, #tpu.memory_space<vmem>>, vector<32x128xf32>
    %c0_34 = arith.constant 0 : index
    %c0_35 = arith.constant 0 : index
    %48 = vector.load %arg1[%c0_34, %c0_35] : memref<32x32xf32, #tpu.memory_space<vmem>>, vector<32x32xf32>
    %cst_36 = arith.constant dense<0.000000e+00> : vector<32x128xf32>
    %49 = tpu.matmul %48, %47, %cst_36 {dimension_numbers = #tpu.dot_dimension_numbers<[1], [0], [0], [1], [0, 0, 1, 1], [], []>} : vector<32x32xf32>, vector<32x128xf32>, vector<32x128xf32> -> vector<32x128xf32>
    %c0_37 = arith.constant 0 : index
    %c0_38 = arith.constant 0 : index
    %50 = vector.load %arg8[%c0_37, %c0_38] : memref<32x256xf32, #tpu.memory_space<vmem>>, vector<32x128xf32>
    tpu.vector_store %arg8[%c0_37, %c0_38], %49 {strides = array<i32>} : memref<32x256xf32, #tpu.memory_space<vmem>>, vector<32x128xf32>,
    %c0_39 = arith.constant 0 : index
    %c0_40 = arith.constant 0 : index
    %51 = vector.load %arg8[%c0_39, %c0_40] : memref<32x256xf32, #tpu.memory_space<vmem>>, vector<32x256xf32>
    %c0_41 = arith.constant 0 : index
    %c1 = arith.constant 1 : index
    %c0_42 = arith.constant 0 : index
    %c0_43 = arith.constant 0 : index
    %52 = vector.load %arg3[%c0_41, %c1, %c0_42, %c0_43] : memref<1x3x256x128xf32, #tpu.memory_space<vmem>>, vector<1x1x256x128xf32>
    %53 = vector.shape_cast %52 : vector<1x1x256x128xf32> to vector<256x128xf32>
    %cst_44 = arith.constant dense<0.000000e+00> : vector<32x128xf32>
    %54 = tpu.matmul %51, %53, %cst_44 {dimension_numbers = #tpu.dot_dimension_numbers<[1], [0], [0], [1], [0, 0, 1, 1], [], []>} : vector<32x256xf32>, vector<256x128xf32>, vector<32x128xf32> -> vector<32x128xf32>
    %cst_45 = arith.constant dense<0.000000e+00> : vector<128xf32>
    %55 = vector.multi_reduction <add>, %54, %cst_45 [0] : vector<32x128xf32> to vector<128xf32>
    %56 = vector.shape_cast %55 : vector<128xf32> to vector<1x128xf32>
    %cst_46 = arith.constant 0.0333333351 : f32
    %57 = vector.broadcast %cst_46 : f32 to vector<1x128xf32>
    %58 = arith.mulf %56, %57 : vector<1x128xf32>
    %59 = arith.mulf %54, %54 : vector<32x128xf32>
    %cst_47 = arith.constant dense<0.000000e+00> : vector<128xf32>
    %60 = vector.multi_reduction <add>, %59, %cst_47 [0] : vector<32x128xf32> to vector<128xf32>
    %61 = vector.shape_cast %60 : vector<128xf32> to vector<1x128xf32>
    %cst_48 = arith.constant 0.0333333351 : f32
    %62 = vector.broadcast %cst_48 : f32 to vector<1x128xf32>
    %63 = arith.mulf %61, %62 : vector<1x128xf32>
    %64 = arith.mulf %58, %58 : vector<1x128xf32>
    %65 = arith.subf %63, %64 : vector<1x128xf32>
    %cst_49 = arith.constant 0.000000e+00 : f32
    %66 = vector.broadcast %cst_49 : f32 to vector<1x128xf32>
    %67 = arith.maximumf %65, %66 : vector<1x128xf32>
    %c0_50 = arith.constant 0 : index
    %c1_51 = arith.constant 1 : index
    %c0_52 = arith.constant 0 : index
    %c0_53 = arith.constant 0 : index
    %68 = vector.load %arg5[%c0_50, %c1_51, %c0_52, %c0_53] : memref<1x2x1x128xf32, #tpu.memory_space<vmem>>, vector<1x1x1x128xf32>
    %69 = vector.shape_cast %68 : vector<1x1x1x128xf32> to vector<1x128xf32>
    %cst_54 = arith.constant 9.99999974E-6 : f32
    %70 = vector.broadcast %cst_54 : f32 to vector<1x128xf32>
    %71 = arith.addf %67, %70 : vector<1x128xf32>
    %72 = math.rsqrt %71 : vector<1x128xf32>
    %73 = arith.mulf %69, %72 : vector<1x128xf32>
    %c0_55 = arith.constant 0 : index
    %c1_56 = arith.constant 1 : index
    %c0_57 = arith.constant 0 : index
    %c0_58 = arith.constant 0 : index
    %74 = vector.load %arg6[%c0_55, %c1_56, %c0_57, %c0_58] : memref<1x2x1x128xf32, #tpu.memory_space<vmem>>, vector<1x1x1x128xf32>
    %75 = vector.shape_cast %74 : vector<1x1x1x128xf32> to vector<1x128xf32>
    %76 = arith.mulf %58, %73 : vector<1x128xf32>
    %77 = arith.subf %75, %76 : vector<1x128xf32>
    %78 = vector.broadcast %73 : vector<1x128xf32> to vector<32x128xf32>
    %79 = arith.mulf %54, %78 : vector<32x128xf32>
    %80 = vector.broadcast %77 : vector<1x128xf32> to vector<32x128xf32>
    %81 = arith.addf %79, %80 : vector<32x128xf32>
    %cst_59 = arith.constant 0.000000e+00 : f32
    %82 = vector.broadcast %cst_59 : f32 to vector<32x128xf32>
    %83 = arith.maximumf %81, %82 : vector<32x128xf32>
    %84 = vector.broadcast %4 : vector<32x1xf32> to vector<32x128xf32>
    %85 = arith.mulf %83, %84 : vector<32x128xf32>
    %c0_60 = arith.constant 0 : index
    %c128_61 = arith.constant 128 : index
    %86 = vector.load %arg8[%c0_60, %c128_61] : memref<32x256xf32, #tpu.memory_space<vmem>>, vector<32x128xf32>
    tpu.vector_store %arg8[%c0_60, %c128_61], %85 {strides = array<i32>} : memref<32x256xf32, #tpu.memory_space<vmem>>, vector<32x128xf32>,
    %c0_62 = arith.constant 0 : index
    %c128_63 = arith.constant 128 : index
    %87 = vector.load %arg8[%c0_62, %c128_63] : memref<32x256xf32, #tpu.memory_space<vmem>>, vector<32x128xf32>
    %c0_64 = arith.constant 0 : index
    %c0_65 = arith.constant 0 : index
    %88 = vector.load %arg1[%c0_64, %c0_65] : memref<32x32xf32, #tpu.memory_space<vmem>>, vector<32x32xf32>
    %cst_66 = arith.constant dense<0.000000e+00> : vector<32x128xf32>
    %89 = tpu.matmul %88, %87, %cst_66 {dimension_numbers = #tpu.dot_dimension_numbers<[1], [0], [0], [1], [0, 0, 1, 1], [], []>} : vector<32x32xf32>, vector<32x128xf32>, vector<32x128xf32> -> vector<32x128xf32>
    %c0_67 = arith.constant 0 : index
    %c0_68 = arith.constant 0 : index
    %90 = vector.load %arg8[%c0_67, %c0_68] : memref<32x256xf32, #tpu.memory_space<vmem>>, vector<32x128xf32>
    tpu.vector_store %arg8[%c0_67, %c0_68], %89 {strides = array<i32>} : memref<32x256xf32, #tpu.memory_space<vmem>>, vector<32x128xf32>,
    %c0_69 = arith.constant 0 : index
    %c0_70 = arith.constant 0 : index
    %91 = vector.load %arg8[%c0_69, %c0_70] : memref<32x256xf32, #tpu.memory_space<vmem>>, vector<32x256xf32>
    %c0_71 = arith.constant 0 : index
    %c2 = arith.constant 2 : index
    %c0_72 = arith.constant 0 : index
    %c0_73 = arith.constant 0 : index
    %92 = vector.load %arg3[%c0_71, %c2, %c0_72, %c0_73] : memref<1x3x256x128xf32, #tpu.memory_space<vmem>>, vector<1x1x256x128xf32>
    %93 = vector.shape_cast %92 : vector<1x1x256x128xf32> to vector<256x128xf32>
    %cst_74 = arith.constant dense<0.000000e+00> : vector<32x128xf32>
    %94 = tpu.matmul %91, %93, %cst_74 {dimension_numbers = #tpu.dot_dimension_numbers<[1], [0], [0], [1], [0, 0, 1, 1], [], []>} : vector<32x256xf32>, vector<256x128xf32>, vector<32x128xf32> -> vector<32x128xf32>
    %c0_75 = arith.constant 0 : index
    %c0_76 = arith.constant 0 : index
    %c0_77 = arith.constant 0 : index
    %95 = vector.load %arg4[%c0_75, %c0_76, %c0_77] : memref<1x1x128xf32, #tpu.memory_space<vmem>>, vector<1x1x128xf32>
    %96 = vector.shape_cast %95 : vector<1x1x128xf32> to vector<1x128xf32>
    %97 = vector.broadcast %96 : vector<1x128xf32> to vector<32x128xf32>
    %98 = arith.addf %94, %97 : vector<32x128xf32>
    %c0_78 = arith.constant 0 : index
    %c0_79 = arith.constant 0 : index
    %c0_80 = arith.constant 0 : index
    %99 = vector.load %arg7[%c0_78, %c0_79, %c0_80] : memref<1x32x128xf32, #tpu.memory_space<vmem>>, vector<1x32x128xf32>
    %100 = vector.shape_cast %99 : vector<1x32x128xf32> to vector<32x128xf32>
    %101 = vector.shape_cast %98 : vector<32x128xf32> to vector<1x32x128xf32>
    tpu.vector_store %arg7[%c0_78, %c0_79, %c0_80], %101 {strides = array<i32>} : memref<1x32x128xf32, #tpu.memory_space<vmem>>, vector<1x32x128xf32>,
    return
  }
  func.func @transform_0(%arg0: i32) -> (i32, i32) {
    %c0_i32 = arith.constant 0 : i32
    %c0_i32_0 = arith.constant 0 : i32
    %c0_i32_1 = arith.constant 0 : i32
    return %c0_i32, %c0_i32_0 : i32, i32
  }
  func.func @transform_1(%arg0: i32) -> (i32, i32) {
    %c0_i32 = arith.constant 0 : i32
    %c0_i32_0 = arith.constant 0 : i32
    %c0_i32_1 = arith.constant 0 : i32
    return %c0_i32, %c0_i32_0 : i32, i32
  }
  func.func @transform_2(%arg0: i32) -> (i32, i32, i32, i32) {
    %c0_i32 = arith.constant 0 : i32
    %c0_i32_0 = arith.constant 0 : i32
    %c0_i32_1 = arith.constant 0 : i32
    %c0_i32_2 = arith.constant 0 : i32
    return %arg0, %c0_i32, %c0_i32_0, %c0_i32_1 : i32, i32, i32, i32
  }
  func.func @transform_3(%arg0: i32) -> (i32, i32, i32) {
    %c0_i32 = arith.constant 0 : i32
    %c0_i32_0 = arith.constant 0 : i32
    %c0_i32_1 = arith.constant 0 : i32
    return %arg0, %c0_i32, %c0_i32_0 : i32, i32, i32
  }
  func.func @transform_4(%arg0: i32) -> (i32, i32, i32, i32) {
    %c0_i32 = arith.constant 0 : i32
    %c0_i32_0 = arith.constant 0 : i32
    %c0_i32_1 = arith.constant 0 : i32
    %c0_i32_2 = arith.constant 0 : i32
    return %arg0, %c0_i32, %c0_i32_0, %c0_i32_1 : i32, i32, i32, i32
  }
  func.func @transform_5(%arg0: i32) -> (i32, i32, i32, i32) {
    %c0_i32 = arith.constant 0 : i32
    %c0_i32_0 = arith.constant 0 : i32
    %c0_i32_1 = arith.constant 0 : i32
    %c0_i32_2 = arith.constant 0 : i32
    return %arg0, %c0_i32, %c0_i32_0, %c0_i32_1 : i32, i32, i32, i32
  }
  func.func @transform_6(%arg0: i32) -> (i32, i32, i32) {
    %c0_i32 = arith.constant 0 : i32
    %c0_i32_0 = arith.constant 0 : i32
    %c0_i32_1 = arith.constant 0 : i32
    return %arg0, %c0_i32, %c0_i32_0 : i32, i32, i32
  }
}

</mosaic_0001>

<llo_original>
// kernel: tpu_custom_call.1
$region0: #{tpu_custom_call.1}
  #allocation0 [shape = 'u32[]', space=smem, size = 0x4, offset = 0x4, fixed_abs, tag = 'smem constant byte address 0x4 - core index']
  #allocation1 [shape = 'u32[144,128]{1,0:T(1,128)}', space=vmem, size = 0x12000, scoped, tag = 'internal scratch']
  #allocation2 [shape = 'f32[32,256]{1,0:T(8,128)}', space=vmem, size = 0x8000, scoped, tag = 'scratch operand']
  %s0 = inlined_call_operand.hbm [shape: f32[32,32], index: 0, kind: input, shape index: {}]
  %s1 = inlined_call_operand.hbm [shape: f32[32,128], index: 1, kind: input, shape index: {}]
  %s2 = inlined_call_operand.hbm [shape: f32[1,3,256,128], index: 2, kind: input, shape index: {}]
  %s3 = inlined_call_operand.vmem [shape: f32[1,1,128], index: 3, kind: input, shape index: {}]
  %s4 = inlined_call_operand.vmem [shape: f32[1,2,1,128], index: 4, kind: input, shape index: {}]
  %s5 = inlined_call_operand.vmem [shape: f32[1,2,1,128], index: 5, kind: input, shape index: {}]
  %s6 = inlined_call_operand.hbm [shape: f32[1,32,128], index: 6, kind: output, shape index: {}]
  %s7 = sld [smem:[#allocation0]]
  $region46: #{tpu_custom_call.1} parent=0
    _
  %s9 = ssub.s32 1, %s7
  %s10 = scalar_select 0, %s9, %s7
  $region1: #{tpu_custom_call.1} parent=0
    #allocation3 [shape = 'u8[16384]{0}', space=vmem, size = 0x4000, scoped, tag = 'input window, operand 0, single buffered']
    #allocation4 [shape = 's32[1]{0}', space=sflag, size = 0x4, scoped, tag = 'scoped memory for tpu_custom_call.1']
    #allocation5 [shape = 's32[1]{0}', space=sflag, size = 0x4, scoped, tag = 'scoped memory for tpu_custom_call.1']
    #allocation6 [shape = 'u8[16384]{0}', space=vmem, size = 0x4000, scoped, tag = 'input window, operand 1, single buffered']
    #allocation7 [shape = 's32[1]{0}', space=sflag, size = 0x4, scoped, tag = 'scoped memory for tpu_custom_call.1']
    #allocation8 [shape = 'u8[393216]{0}', space=vmem, size = 0x60000, scoped, tag = 'input window, operand 2, single buffered']
    #allocation9 [shape = 'u8[16384]{0}', space=vmem, size = 0x4000, scoped, tag = 'output window, operand 0, single buffered']
    %11 = vsyncpa [#allocation4], 0
    %12 = vsyncpa [#allocation7], 0
    %13 = vsyncpa [#allocation5], 0
    // Predicated region
    $region2: #{tpu_custom_call.1} parent=1 // pred_check
      _
    $region3: #{tpu_custom_call.1} parent=1 // pred_check_branch
      %15 = sbr.rel (0) target = $region5
    $region4: #{tpu_custom_call.1} parent=1 // pred_region
      %s17 = ssub.s32 512, 512
      %18 = vsyncadd [#allocation4], %s17
      %s19 = sshll.u32 [#allocation3], 4
      %s20 = int_to_ptr.vmem [resolvable:$true] %s19
      %25 = dma.hbm_to_vmem [thread:$0]  %s0, 512, %s20, [#allocation4], 128, 128, 8
    $region5: #{tpu_custom_call.1} parent=1 // pred_fallthru
      _
    // Predicated region
    $region6: #{tpu_custom_call.1} parent=1 // pred_check
      _
    $region7: #{tpu_custom_call.1} parent=1 // pred_check_branch
      %27 = sbr.rel (0) target = $region9
    $region8: #{tpu_custom_call.1} parent=1 // pred_region
      %s29 = ssub.s32 512, 512
      %30 = vsyncadd [#allocation7], %s29
      %s31 = sshll.u32 [#allocation6], 4
      %s32 = int_to_ptr.vmem [resolvable:$true] %s31
      %37 = dma.hbm_to_vmem [thread:$0]  %s1, 512, %s32, [#allocation7], 128, 128, 8
    $region9: #{tpu_custom_call.1} parent=1 // pred_fallthru
      _
    // Predicated region
    $region10: #{tpu_custom_call.1} parent=1 // pred_check
      _
    $region11: #{tpu_custom_call.1} parent=1 // pred_check_branch
      %39 = sbr.rel (0) target = $region13
    $region12: #{tpu_custom_call.1} parent=1 // pred_region
      %s41 = ssub.s32 12288, 12288
      %42 = vsyncadd [#allocation7], %s41
      %s43 = sshll.u32 [#allocation8], 4
      %s44 = int_to_ptr.vmem [resolvable:$true] %s43
      %49 = dma.hbm_to_vmem [thread:$0]  %s2, 12288, %s44, [#allocation7], 128, 128, 8
    $region13: #{tpu_custom_call.1} parent=1 // pred_fallthru
      _
    // Predicated region
    $region14: #{tpu_custom_call.1} parent=1 // pred_check
      _
    $region15: #{tpu_custom_call.1} parent=1 // pred_check_branch
      %51 = sbr.rel (0) target = $region17
    $region16: #{tpu_custom_call.1} parent=1 // pred_region
      _
    $region17: #{tpu_custom_call.1} parent=1 // pred_fallthru
      _
    // Predicated region
    $region18: #{tpu_custom_call.1} parent=1 // pred_check
      _
    $region19: #{tpu_custom_call.1} parent=1 // pred_check_branch
      %53 = sbr.rel (0) target = $region21
    $region20: #{tpu_custom_call.1} parent=1 // pred_region
      _
    $region21: #{tpu_custom_call.1} parent=1 // pred_fallthru
      _
    // Predicated region
    $region22: #{tpu_custom_call.1} parent=1 // pred_check
      _
    $region23: #{tpu_custom_call.1} parent=1 // pred_check_branch
      %55 = sbr.rel (0) target = $region25
    $region24: #{tpu_custom_call.1} parent=1 // pred_region
      _
    $region25: #{tpu_custom_call.1} parent=1 // pred_fallthru
      _
    // Predicated region
    $region26: #{tpu_custom_call.1} parent=1 // pred_check
      _
    $region27: #{tpu_custom_call.1} parent=1 // pred_check_branch
      %57 = sbr.rel (0) target = $region29
    $region28: #{tpu_custom_call.1} parent=1 // pred_region
      %58 = dma.done [#allocation4], 512
    $region29: #{tpu_custom_call.1} parent=1 // pred_fallthru
      _
    // Predicated region
    $region30: #{tpu_custom_call.1} parent=1 // pred_check
      _
    $region31: #{tpu_custom_call.1} parent=1 // pred_check_branch
      %60 = sbr.rel (0) target = $region33
    $region32: #{tpu_custom_call.1} parent=1 // pred_region
      %61 = dma.done [#allocation7], 512
    $region33: #{tpu_custom_call.1} parent=1 // pred_fallthru
      _
    // Predicated region
    $region34: #{tpu_custom_call.1} parent=1 // pred_check
      _
    $region35: #{tpu_custom_call.1} parent=1 // pred_check_branch
      %63 = sbr.rel (0) target = $region37
    $region36: #{tpu_custom_call.1} parent=1 // pred_region
      %64 = dma.done [#allocation7], 12288
    $region37: #{tpu_custom_call.1} parent=1 // pred_fallthru
      _
    %v65 = vlaneseq
    %v66 = vshrl.u32 %v65, 7
    %v67 = vadd.s32 %v66, 8
    %v68 = vadd.s32 %v66, 16
    %v69 = vadd.s32 %v66, 24
    %vm70 = vcmp.lt.s32.totalorder %v66, 30
    %vm71 = vcmp.lt.s32.totalorder %v67, 30
    %vm72 = vcmp.lt.s32.totalorder %v68, 30
    %vm73 = vcmp.lt.s32.totalorder %v69, 30
    %v74 = vsel %vm70, 1, 0
    %v75 = vsel %vm71, 1, 0
    %v76 = vsel %vm72, 1, 0
    %v77 = vsel %vm73, 1, 0
    %v78 = vcvt.s32.f32 %v74
    %v79 = vcvt.s32.f32 %v75
    %v80 = vcvt.s32.f32 %v76
    %v81 = vcvt.s32.f32 %v77
    %v82 = vld [vmem:[#allocation6] sm:$0xff]
    %v83 = vld [vmem:[#allocation6 + $0x8] sm:$0xff]
    %v84 = vld [vmem:[#allocation6 + $0x10] sm:$0xff]
    %v85 = vld [vmem:[#allocation6 + $0x18] sm:$0xff]
    %86 = vst [vmem:[#allocation2 + $0x8] sm:$0xff] %v82
    %87 = vst [vmem:[#allocation2 + $0x18] sm:$0xff] %v83
    %88 = vst [vmem:[#allocation2 + $0x28] sm:$0xff] %v84
    %89 = vst [vmem:[#allocation2 + $0x38] sm:$0xff] %v85
    %v90 = vld [vmem:[#allocation2 + $0x8] sm:$0xff]
    %v91 = vld [vmem:[#allocation2 + $0x18] sm:$0xff]
    %v92 = vld [vmem:[#allocation2 + $0x28] sm:$0xff]
    %v93 = vld [vmem:[#allocation2 + $0x38] sm:$0xff]
    %v94 = vld [vmem:[#allocation3] sm:$0xff]
    %v95 = vld [vmem:[#allocation3 + $0x8] sm:$0xff]
    %v96 = vld [vmem:[#allocation3 + $0x10] sm:$0xff]
    %v97 = vld [vmem:[#allocation3 + $0x18] sm:$0xff]
    %vm98 = vcmask 261120
    %v100 = vsel %vm98, %v94, 0
    %v103 = vsel %vm98, %v95, 0
    %v106 = vsel %vm98, %v96, 0
    %v109 = vsel %vm98, %v97, 0
    %111 = vmatprep.subr.mxu0 0.0
    %112 = vmatpush1.msra.mxu0 %v90
    %113 = vmatprep.subr.mxu0 0.0
    %114 = vmatpush1.msra.mxu0 %v91
    %115 = vmatprep.subr.mxu0 0.0
    %116 = vmatpush1.msra.mxu0 %v92
    %117 = vmatprep.subr.mxu0 0.0
    %118 = vmatpush1.msra.mxu0 %v93
    %119 = vmatprep.subr.mxu0 0.0
    %120 = vmatpush1.msra.mxu0 0.0
    %121 = vmatprep.subr.mxu0 0.0
    %122 = vmatpush1.msra.mxu0 0.0
    %123 = vmatprep.subr.mxu0 0.0
    %124 = vmatpush1.msra.mxu0 0.0
    %125 = vmatprep.subr.mxu0 0.0
    %126 = vmatpush1.msra.mxu0 0.0
    %127 = vmatprep.subr.mxu0 0.0
    %128 = vmatpush1.msra.mxu0 0.0
    %129 = vmatprep.subr.mxu0 0.0
    %130 = vmatpush1.msra.mxu0 0.0
    %131 = vmatprep.subr.mxu0 0.0
    %132 = vmatpush1.msra.mxu0 0.0
    %133 = vmatprep.subr.mxu0 0.0
    %134 = vmatpush1.msra.mxu0 0.0
    %135 = vmatprep.subr.mxu0 0.0
    %136 = vmatpush1.msra.mxu0 0.0
    %137 = vmatprep.subr.mxu0 0.0
    %138 = vmatpush1.msra.mxu0 0.0
    %139 = vmatprep.subr.mxu0 0.0
    %140 = vmatpush1.msra.mxu0 0.0
    %141 = vmatprep.subr.mxu0 0.0
    %142 = vmatpush1.msra.mxu0 0.0
    %143 = vmatprep.subr.mxu0 0.0
    %144 = vmatpush1.msra.mxu0 0.0
    %145 = vmatprep.subr.mxu0 0.0
    %146 = vmatpush1.msra.mxu0 0.0
    %147 = vmatprep.subr.mxu0 0.0
    %148 = vmatpush1.msra.mxu0 0.0
    %149 = vmatprep.subr.mxu0 0.0
    %150 = vmatpush1.msra.mxu0 0.0
    %151 = vmatprep.subr.mxu0 0.0
    %152 = vmatpush1.msra.mxu0 0.0
    %153 = vmatprep.subr.mxu0 0.0
    %154 = vmatpush1.msra.mxu0 0.0
    %155 = vmatprep.subr.mxu0 0.0
    %156 = vmatpush1.msra.mxu0 0.0
    %157 = vmatprep.subr.mxu0 0.0
    %158 = vmatpush1.msra.mxu0 0.0
    %159 = vmatprep.subr.mxu0 0.0
    %160 = vmatpush1.msra.mxu0 0.0
    %161 = vmatprep.subr.mxu0 0.0
    %162 = vmatpush1.msra.mxu0 0.0
    %163 = vmatprep.subr.mxu0 0.0
    %164 = vmatpush1.msra.mxu0 0.0
    %165 = vmatprep.subr.mxu0 0.0
    %166 = vmatpush1.msra.mxu0 0.0
    %167 = vmatprep.subr.mxu0 0.0
    %168 = vmatpush1.msra.mxu0 0.0
    %169 = vmatprep.subr.mxu0 0.0
    %170 = vmatpush1.msra.mxu0 0.0
    %171 = vmatprep.subr.mxu0 0.0
    %172 = vmatpush1.msra.mxu0 0.0
    %173 = vmatprep.subr.mxu0 0.0
    %174 = vmatpush1.msra.mxu0 0.0
    %175 = vmatprep.mubr.f32.mxu0 0.0
    %176 = vmatmul.mubr.f32.gmra.mrb[0].mxu0 %v100
    %v177 = vpop.f32.mrb[0].mxu0
    %v178 = vadd.f32 0.0, %v177
    %v179 = vpop.f32.mrb[0].mxu0
    %180 = vmatprep.mubr.f32.mxu0 0.0
    %181 = vmatmul.mubr.f32.gmra.mrb[0].mxu0 %v103
    %v182 = vpop.f32.mrb[0].mxu0
    %v183 = vadd.f32 0.0, %v182
    %v184 = vpop.f32.mrb[0].mxu0
    %185 = vmatprep.mubr.f32.mxu0 0.0
    %186 = vmatmul.mubr.f32.gmra.mrb[0].mxu0 %v106
    %v187 = vpop.f32.mrb[0].mxu0
    %v188 = vadd.f32 0.0, %v187
    %v189 = vpop.f32.mrb[0].mxu0
    %190 = vmatprep.mubr.f32.mxu0 0.0
    %191 = vmatmul.mubr.f32.gmra.mrb[0].mxu0 %v109
    %v192 = vpop.f32.mrb[0].mxu0
    %v193 = vadd.f32 0.0, %v192
    %v194 = vpop.f32.mrb[0].mxu0
    %195 = vdwg.mxu0
    %196 = vst [vmem:[#allocation2] sm:$0xff] %v178
    %197 = vst [vmem:[#allocation2 + $0x10] sm:$0xff] %v183
    %198 = vst [vmem:[#allocation2 + $0x20] sm:$0xff] %v188
    %199 = vst [vmem:[#allocation2 + $0x30] sm:$0xff] %v193
    %v200 = vld [vmem:[#allocation2] sm:$0xff]
    %v201 = vld [vmem:[#allocation2 + $0x8] sm:$0xff]
    %v202 = vld [vmem:[#allocation2 + $0x10] sm:$0xff]
    %v203 = vld [vmem:[#allocation2 + $0x18] sm:$0xff]
    %v204 = vld [vmem:[#allocation2 + $0x20] sm:$0xff]
    %v205 = vld [vmem:[#allocation2 + $0x28] sm:$0xff]
    %v206 = vld [vmem:[#allocation2 + $0x30] sm:$0xff]
    %v207 = vld [vmem:[#allocation2 + $0x38] sm:$0xff]
    %v208 = vld [vmem:[#allocation8] sm:$0xff]
    %v209 = vld [vmem:[#allocation8 + $0x8] sm:$0xff]
    %v210 = vld [vmem:[#allocation8 + $0x10] sm:$0xff]
    %v211 = vld [vmem:[#allocation8 + $0x18] sm:$0xff]
    %v212 = vld [vmem:[#allocation8 + $0x20] sm:$0xff]
    %v213 = vld [vmem:[#allocation8 + $0x28] sm:$0xff]
    %v214 = vld [vmem:[#allocation8 + $0x30] sm:$0xff]
    %v215 = vld [vmem:[#allocation8 + $0x38] sm:$0xff]
    %v216 = vld [vmem:[#allocation8 + $0x40] sm:$0xff]
    %v217 = vld [vmem:[#allocation8 + $0x48] sm:$0xff]
    %v218 = vld [vmem:[#allocation8 + $0x50] sm:$0xff]
    %v219 = vld [vmem:[#allocation8 + $0x58] sm:$0xff]
    %v220 = vld [vmem:[#allocation8 + $0x60] sm:$0xff]
    %v221 = vld [vmem:[#allocation8 + $0x68] sm:$0xff]
    %v222 = vld [vmem:[#allocation8 + $0x70] sm:$0xff]
    %v223 = vld [vmem:[#allocation8 + $0x78] sm:$0xff]
    %v224 = vld [vmem:[#allocation8 + $0x80] sm:$0xff]
    %v225 = vld [vmem:[#allocation8 + $0x88] sm:$0xff]
    %v226 = vld [vmem:[#allocation8 + $0x90] sm:$0xff]
    %v227 = vld [vmem:[#allocation8 + $0x98] sm:$0xff]
    %v228 = vld [vmem:[#allocation8 + $0xa0] sm:$0xff]
    %v229 = vld [vmem:[#allocation8 + $0xa8] sm:$0xff]
    %v230 = vld [vmem:[#allocation8 + $0xb0] sm:$0xff]
    %v231 = vld [vmem:[#allocation8 + $0xb8] sm:$0xff]
    %v232 = vld [vmem:[#allocation8 + $0xc0] sm:$0xff]
    %v233 = vld [vmem:[#allocation8 + $0xc8] sm:$0xff]
    %v234 = vld [vmem:[#allocation8 + $0xd0] sm:$0xff]
    %v235 = vld [vmem:[#allocation8 + $0xd8] sm:$0xff]
    %v236 = vld [vmem:[#allocation8 + $0xe0] sm:$0xff]
    %v237 = vld [vmem:[#allocation8 + $0xe8] sm:$0xff]
    %v238 = vld [vmem:[#allocation8 + $0xf0] sm:$0xff]
    %v239 = vld [vmem:[#allocation8 + $0xf8] sm:$0xff]
    %240 = vmatprep.subr.mxu0 0.0
    %241 = vmatpush1.msra.mxu0 %v208
    %242 = vmatprep.subr.mxu0 0.0
    %243 = vmatpush1.msra.mxu0 %v209
    %244 = vmatprep.subr.mxu0 0.0
    %245 = vmatpush1.msra.mxu0 %v210
    %246 = vmatprep.subr.mxu0 0.0
    %247 = vmatpush1.msra.mxu0 %v211
    %248 = vmatprep.subr.mxu0 0.0
    %249 = vmatpush1.msra.mxu0 %v212
    %250 = vmatprep.subr.mxu0 0.0
    %251 = vmatpush1.msra.mxu0 %v213
    %252 = vmatprep.subr.mxu0 0.0
    %253 = vmatpush1.msra.mxu0 %v214
    %254 = vmatprep.subr.mxu0 0.0
    %255 = vmatpush1.msra.mxu0 %v215
    %256 = vmatprep.subr.mxu0 0.0
    %257 = vmatpush1.msra.mxu0 %v216
    %258 = vmatprep.subr.mxu0 0.0
    %259 = vmatpush1.msra.mxu0 %v217
    %260 = vmatprep.subr.mxu0 0.0
    %261 = vmatpush1.msra.mxu0 %v218
    %262 = vmatprep.subr.mxu0 0.0
    %263 = vmatpush1.msra.mxu0 %v219
    %264 = vmatprep.subr.mxu0 0.0
    %265 = vmatpush1.msra.mxu0 %v220
    %266 = vmatprep.subr.mxu0 0.0
    %267 = vmatpush1.msra.mxu0 %v221
    %268 = vmatprep.subr.mxu0 0.0
    %269 = vmatpush1.msra.mxu0 %v222
    %270 = vmatprep.subr.mxu0 0.0
    %271 = vmatpush1.msra.mxu0 %v223
    %272 = vmatprep.subr.mxu0 0.0
    %273 = vmatpush1.msra.mxu0 %v224
    %274 = vmatprep.subr.mxu0 0.0
    %275 = vmatpush1.msra.mxu0 %v225
    %276 = vmatprep.subr.mxu0 0.0
    %277 = vmatpush1.msra.mxu0 %v226
    %278 = vmatprep.subr.mxu0 0.0
    %279 = vmatpush1.msra.mxu0 %v227
    %280 = vmatprep.subr.mxu0 0.0
    %281 = vmatpush1.msra.mxu0 %v228
    %282 = vmatprep.subr.mxu0 0.0
    %283 = vmatpush1.msra.mxu0 %v229
    %284 = vmatprep.subr.mxu0 0.0
    %285 = vmatpush1.msra.mxu0 %v230
    %286 = vmatprep.subr.mxu0 0.0
    %287 = vmatpush1.msra.mxu0 %v231
    %288 = vmatprep.subr.mxu0 0.0
    %289 = vmatpush1.msra.mxu0 %v232
    %290 = vmatprep.subr.mxu0 0.0
    %291 = vmatpush1.msra.mxu0 %v233
    %292 = vmatprep.subr.mxu0 0.0
    %293 = vmatpush1.msra.mxu0 %v234
    %294 = vmatprep.subr.mxu0 0.0
    %295 = vmatpush1.msra.mxu0 %v235
    %296 = vmatprep.subr.mxu0 0.0
    %297 = vmatpush1.msra.mxu0 %v236
    %298 = vmatprep.subr.mxu0 0.0
    %299 = vmatpush1.msra.mxu0 %v237
    %300 = vmatprep.subr.mxu0 0.0
    %301 = vmatpush1.msra.mxu0 %v238
    %302 = vmatprep.subr.mxu0 0.0
    %303 = vmatpush1.msra.mxu0 %v239
    %304 = vmatprep.mubr.f32.mxu0 %v201
    %305 = vmatmul.mubr.f32.gmra.mrb[0].mxu0 %v200
    %v306 = vpop.f32.mrb[0].mxu0
    %v307 = vadd.f32 0.0, %v306
    %v308 = vpop.f32.mrb[0].mxu0
    %309 = vmatprep.mubr.f32.mxu0 %v203
    %310 = vmatmul.mubr.f32.gmra.mrb[0].mxu0 %v202
    %v311 = vpop.f32.mrb[0].mxu0
    %v312 = vadd.f32 0.0, %v311
    %v313 = vpop.f32.mrb[0].mxu0
    %314 = vmatprep.mubr.f32.mxu0 %v205
    %315 = vmatmul.mubr.f32.gmra.mrb[0].mxu0 %v204
    %v316 = vpop.f32.mrb[0].mxu0
    %v317 = vadd.f32 0.0, %v316
    %v318 = vpop.f32.mrb[0].mxu0
    %319 = vmatprep.mubr.f32.mxu0 %v207
    %320 = vmatmul.mubr.f32.gmra.mrb[0].mxu0 %v206
    %v321 = vpop.f32.mrb[0].mxu0
    %v322 = vadd.f32 0.0, %v321
    %v323 = vpop.f32.mrb[0].mxu0
    %324 = vdwg.mxu0
    %v325 = vadd.f32 %v307, %v312
    %v326 = vadd.f32 %v325, %v317
    %v327 = vadd.f32 %v326, %v322
    %v328 = vrot.slane %v327, 4
    %v329 = vadd.f32 %v327, %v328
    %v330 = vrot.slane %v329, 2
    %v331 = vadd.f32 %v329, %v330
    %v332 = vrot.slane %v331, 1
    %v333 = vadd.f32 %v331, %v332
    %v334 = vmul.f32 %v333, 0.033333335
    %v335 = vmul.f32 %v307, %v307
    %v336 = vmul.f32 %v312, %v312
    %v337 = vmul.f32 %v317, %v317
    %v338 = vmul.f32 %v322, %v322
    %v339 = vadd.f32 %v335, %v336
    %v340 = vadd.f32 %v339, %v337
    %v341 = vadd.f32 %v340, %v338
    %v342 = vrot.slane %v341, 4
    %v343 = vadd.f32 %v341, %v342
    %v344 = vrot.slane %v343, 2
    %v345 = vadd.f32 %v343, %v344
    %v346 = vrot.slane %v345, 1
    %v347 = vadd.f32 %v345, %v346
    %v348 = vmul.f32 %v347, 0.033333335
    %v349 = vmul.f32 %v334, %v334
    %v350 = vsub.f32 %v348, %v349
    %v351 = vmax.f32 %v350, 0.0
    %v352 = vld [vmem:[%s4] sm:$0x1]
    %v353 = vadd.f32 %v351, 1e-05
    %v354 = vrsqrt.pop %v353
    %v355 = vmul.f32 %v352, %v354
    %v356 = vld [vmem:[%s5] sm:$0x1]
    %v357 = vmul.f32 %v334, %v355
    %v358 = vsub.f32 %v356, %v357
    %v360 = vlaneseq
    %v361 = vshrl.u32 %v360, 7
    %v362 = vsub.s32 0, %v361
    %v363 = vrot.slane %v355, %v362
    %v365 = vmul.f32 %v307, %v363
    %v366 = vmul.f32 %v312, %v363
    %v367 = vmul.f32 %v317, %v363
    %v368 = vmul.f32 %v322, %v363
    %v370 = vlaneseq
    %v371 = vshrl.u32 %v370, 7
    %v372 = vsub.s32 0, %v371
    %v373 = vrot.slane %v358, %v372
    %v375 = vadd.f32 %v365, %v373
    %v376 = vadd.f32 %v366, %v373
    %v377 = vadd.f32 %v367, %v373
    %v378 = vadd.f32 %v368, %v373
    %v379 = vmax.f32 %v375, 0.0
    %v380 = vmax.f32 %v376, 0.0
    %v381 = vmax.f32 %v377, 0.0
    %v382 = vmax.f32 %v378, 0.0
    %v383 = vmul.f32 %v379, %v78
    %v384 = vmul.f32 %v380, %v79
    %v385 = vmul.f32 %v381, %v80
    %v386 = vmul.f32 %v382, %v81
    %387 = vst [vmem:[#allocation2 + $0x8] sm:$0xff] %v383
    %388 = vst [vmem:[#allocation2 + $0x18] sm:$0xff] %v384
    %389 = vst [vmem:[#allocation2 + $0x28] sm:$0xff] %v385
    %390 = vst [vmem:[#allocation2 + $0x38] sm:$0xff] %v386
    %v391 = vld [vmem:[#allocation2 + $0x8] sm:$0xff]
    %v392 = vld [vmem:[#allocation2 + $0x18] sm:$0xff]
    %v393 = vld [vmem:[#allocation2 + $0x28] sm:$0xff]
    %v394 = vld [vmem:[#allocation2 + $0x38] sm:$0xff]
    %v395 = vld [vmem:[#allocation3] sm:$0xff]
    %v396 = vld [vmem:[#allocation3 + $0x8] sm:$0xff]
    %v397 = vld [vmem:[#allocation3 + $0x10] sm:$0xff]
    %v398 = vld [vmem:[#allocation3 + $0x18] sm:$0xff]
    %v400 = vsel %vm98, %v395, 0
    %v403 = vsel %vm98, %v396, 0
    %v406 = vsel %vm98, %v397, 0
    %v409 = vsel %vm98, %v398, 0
    %411 = vmatprep.subr.mxu0 0.0
    %412 = vmatpush1.msra.mxu0 %v391
    %413 = vmatprep.subr.mxu0 0.0
    %414 = vmatpush1.msra.mxu0 %v392
    %415 = vmatprep.subr.mxu0 0.0
    %416 = vmatpush1.msra.mxu0 %v393
    %417 = vmatprep.subr.mxu0 0.0
    %418 = vmatpush1.msra.mxu0 %v394
    %419 = vmatprep.subr.mxu0 0.0
    %420 = vmatpush1.msra.mxu0 0.0
    %421 = vmatprep.subr.mxu0 0.0
    %422 = vmatpush1.msra.mxu0 0.0
    %423 = vmatprep.subr.mxu0 0.0
    %424 = vmatpush1.msra.mxu0 0.0
    %425 = vmatprep.subr.mxu0 0.0
    %426 = vmatpush1.msra.mxu0 0.0
    %427 = vmatprep.subr.mxu0 0.0
    %428 = vmatpush1.msra.mxu0 0.0
    %429 = vmatprep.subr.mxu0 0.0
    %430 = vmatpush1.msra.mxu0 0.0
    %431 = vmatprep.subr.mxu0 0.0
    %432 = vmatpush1.msra.mxu0 0.0
    %433 = vmatprep.subr.mxu0 0.0
    %434 = vmatpush1.msra.mxu0 0.0
    %435 = vmatprep.subr.mxu0 0.0
    %436 = vmatpush1.msra.mxu0 0.0
    %437 = vmatprep.subr.mxu0 0.0
    %438 = vmatpush1.msra.mxu0 0.0
    %439 = vmatprep.subr.mxu0 0.0
    %440 = vmatpush1.msra.mxu0 0.0
    %441 = vmatprep.subr.mxu0 0.0
    %442 = vmatpush1.msra.mxu0 0.0
    %443 = vmatprep.subr.mxu0 0.0
    %444 = vmatpush1.msra.mxu0 0.0
    %445 = vmatprep.subr.mxu0 0.0
    %446 = vmatpush1.msra.mxu0 0.0
    %447 = vmatprep.subr.mxu0 0.0
    %448 = vmatpush1.msra.mxu0 0.0
    %449 = vmatprep.subr.mxu0 0.0
    %450 = vmatpush1.msra.mxu0 0.0
    %451 = vmatprep.subr.mxu0 0.0
    %452 = vmatpush1.msra.mxu0 0.0
    %453 = vmatprep.subr.mxu0 0.0
    %454 = vmatpush1.msra.mxu0 0.0
    %455 = vmatprep.subr.mxu0 0.0
    %456 = vmatpush1.msra.mxu0 0.0
    %457 = vmatprep.subr.mxu0 0.0
    %458 = vmatpush1.msra.mxu0 0.0
    %459 = vmatprep.subr.mxu0 0.0
    %460 = vmatpush1.msra.mxu0 0.0
    %461 = vmatprep.subr.mxu0 0.0
    %462 = vmatpush1.msra.mxu0 0.0
    %463 = vmatprep.subr.mxu0 0.0
    %464 = vmatpush1.msra.mxu0 0.0
    %465 = vmatprep.subr.mxu0 0.0
    %466 = vmatpush1.msra.mxu0 0.0
    %467 = vmatprep.subr.mxu0 0.0
    %468 = vmatpush1.msra.mxu0 0.0
    %469 = vmatprep.subr.mxu0 0.0
    %470 = vmatpush1.msra.mxu0 0.0
    %471 = vmatprep.subr.mxu0 0.0
    %472 = vmatpush1.msra.mxu0 0.0
    %473 = vmatprep.subr.mxu0 0.0
    %474 = vmatpush1.msra.mxu0 0.0
    %475 = vmatprep.mubr.f32.mxu0 0.0
    %476 = vmatmul.mubr.f32.gmra.mrb[0].mxu0 %v400
    %v477 = vpop.f32.mrb[0].mxu0
    %v478 = vadd.f32 0.0, %v477
    %v479 = vpop.f32.mrb[0].mxu0
    %480 = vmatprep.mubr.f32.mxu0 0.0
    %481 = vmatmul.mubr.f32.gmra.mrb[0].mxu0 %v403
    %v482 = vpop.f32.mrb[0].mxu0
    %v483 = vadd.f32 0.0, %v482
    %v484 = vpop.f32.mrb[0].mxu0
    %485 = vmatprep.mubr.f32.mxu0 0.0
    %486 = vmatmul.mubr.f32.gmra.mrb[0].mxu0 %v406
    %v487 = vpop.f32.mrb[0].mxu0
    %v488 = vadd.f32 0.0, %v487
    %v489 = vpop.f32.mrb[0].mxu0
    %490 = vmatprep.mubr.f32.mxu0 0.0
    %491 = vmatmul.mubr.f32.gmra.mrb[0].mxu0 %v409
    %v492 = vpop.f32.mrb[0].mxu0
    %v493 = vadd.f32 0.0, %v492
    %v494 = vpop.f32.mrb[0].mxu0
    %495 = vdwg.mxu0
    %496 = vst [vmem:[#allocation2] sm:$0xff] %v478
    %497 = vst [vmem:[#allocation2 + $0x10] sm:$0xff] %v483
    %498 = vst [vmem:[#allocation2 + $0x20] sm:$0xff] %v488
    %499 = vst [vmem:[#allocation2 + $0x30] sm:$0xff] %v493
    %v500 = vld [vmem:[#allocation2] sm:$0xff]
    %v501 = vld [vmem:[#allocation2 + $0x8] sm:$0xff]
    %v502 = vld [vmem:[#allocation2 + $0x10] sm:$0xff]
    %v503 = vld [vmem:[#allocation2 + $0x18] sm:$0xff]
    %v504 = vld [vmem:[#allocation2 + $0x20] sm:$0xff]
    %v505 = vld [vmem:[#allocation2 + $0x28] sm:$0xff]
    %v506 = vld [vmem:[#allocation2 + $0x30] sm:$0xff]
    %v507 = vld [vmem:[#allocation2 + $0x38] sm:$0xff]
    %s508 = scalar_lea.vmem [#allocation8], 256
    %v509 = vld [vmem:[%s508] sm:$0xff]
    %v510 = vld [vmem:[%s508 + $0x8] sm:$0xff]
    %v511 = vld [vmem:[%s508 + $0x10] sm:$0xff]
    %v512 = vld [vmem:[%s508 + $0x18] sm:$0xff]
    %v513 = vld [vmem:[%s508 + $0x20] sm:$0xff]
    %v514 = vld [vmem:[%s508 + $0x28] sm:$0xff]
    %v515 = vld [vmem:[%s508 + $0x30] sm:$0xff]
    %v516 = vld [vmem:[%s508 + $0x38] sm:$0xff]
    %v517 = vld [vmem:[%s508 + $0x40] sm:$0xff]
    %v518 = vld [vmem:[%s508 + $0x48] sm:$0xff]
    %v519 = vld [vmem:[%s508 + $0x50] sm:$0xff]
    %v520 = vld [vmem:[%s508 + $0x58] sm:$0xff]
    %v521 = vld [vmem:[%s508 + $0x60] sm:$0xff]
    %v522 = vld [vmem:[%s508 + $0x68] sm:$0xff]
    %v523 = vld [vmem:[%s508 + $0x70] sm:$0xff]
    %v524 = vld [vmem:[%s508 + $0x78] sm:$0xff]
    %v525 = vld [vmem:[%s508 + $0x80] sm:$0xff]
    %v526 = vld [vmem:[%s508 + $0x88] sm:$0xff]
    %v527 = vld [vmem:[%s508 + $0x90] sm:$0xff]
    %v528 = vld [vmem:[%s508 + $0x98] sm:$0xff]
    %v529 = vld [vmem:[%s508 + $0xa0] sm:$0xff]
    %v530 = vld [vmem:[%s508 + $0xa8] sm:$0xff]
    %v531 = vld [vmem:[%s508 + $0xb0] sm:$0xff]
    %v532 = vld [vmem:[%s508 + $0xb8] sm:$0xff]
    %v533 = vld [vmem:[%s508 + $0xc0] sm:$0xff]
    %v534 = vld [vmem:[%s508 + $0xc8] sm:$0xff]
    %v535 = vld [vmem:[%s508 + $0xd0] sm:$0xff]
    %v536 = vld [vmem:[%s508 + $0xd8] sm:$0xff]
    %v537 = vld [vmem:[%s508 + $0xe0] sm:$0xff]
    %v538 = vld [vmem:[%s508 + $0xe8] sm:$0xff]
    %v539 = vld [vmem:[%s508 + $0xf0] sm:$0xff]
    %v540 = vld [vmem:[%s508 + $0xf8] sm:$0xff]
    %541 = vmatprep.subr.mxu0 0.0
    %542 = vmatpush1.msra.mxu0 %v509
    %543 = vmatprep.subr.mxu0 0.0
    %544 = vmatpush1.msra.mxu0 %v510
    %545 = vmatprep.subr.mxu0 0.0
    %546 = vmatpush1.msra.mxu0 %v511
    %547 = vmatprep.subr.mxu0 0.0
    %548 = vmatpush1.msra.mxu0 %v512
    %549 = vmatprep.subr.mxu0 0.0
    %550 = vmatpush1.msra.mxu0 %v513
    %551 = vmatprep.subr.mxu0 0.0
    %552 = vmatpush1.msra.mxu0 %v514
    %553 = vmatprep.subr.mxu0 0.0
    %554 = vmatpush1.msra.mxu0 %v515
    %555 = vmatprep.subr.mxu0 0.0
    %556 = vmatpush1.msra.mxu0 %v516
    %557 = vmatprep.subr.mxu0 0.0
    %558 = vmatpush1.msra.mxu0 %v517
    %559 = vmatprep.subr.mxu0 0.0
    %560 = vmatpush1.msra.mxu0 %v518
    %561 = vmatprep.subr.mxu0 0.0
    %562 = vmatpush1.msra.mxu0 %v519
    %563 = vmatprep.subr.mxu0 0.0
    %564 = vmatpush1.msra.mxu0 %v520
    %565 = vmatprep.subr.mxu0 0.0
    %566 = vmatpush1.msra.mxu0 %v521
    %567 = vmatprep.subr.mxu0 0.0
    %568 = vmatpush1.msra.mxu0 %v522
    %569 = vmatprep.subr.mxu0 0.0
    %570 = vmatpush1.msra.mxu0 %v523
    %571 = vmatprep.subr.mxu0 0.0
    %572 = vmatpush1.msra.mxu0 %v524
    %573 = vmatprep.subr.mxu0 0.0
    %574 = vmatpush1.msra.mxu0 %v525
    %575 = vmatprep.subr.mxu0 0.0
    %576 = vmatpush1.msra.mxu0 %v526
    %577 = vmatprep.subr.mxu0 0.0
    %578 = vmatpush1.msra.mxu0 %v527
    %579 = vmatprep.subr.mxu0 0.0
    %580 = vmatpush1.msra.mxu0 %v528
    %581 = vmatprep.subr.mxu0 0.0
    %582 = vmatpush1.msra.mxu0 %v529
    %583 = vmatprep.subr.mxu0 0.0
    %584 = vmatpush1.msra.mxu0 %v530
    %585 = vmatprep.subr.mxu0 0.0
    %586 = vmatpush1.msra.mxu0 %v531
    %587 = vmatprep.subr.mxu0 0.0
    %588 = vmatpush1.msra.mxu0 %v532
    %589 = vmatprep.subr.mxu0 0.0
    %590 = vmatpush1.msra.mxu0 %v533
    %591 = vmatprep.subr.mxu0 0.0
    %592 = vmatpush1.msra.mxu0 %v534
    %593 = vmatprep.subr.mxu0 0.0
    %594 = vmatpush1.msra.mxu0 %v535
    %595 = vmatprep.subr.mxu0 0.0
    %596 = vmatpush1.msra.mxu0 %v536
    %597 = vmatprep.subr.mxu0 0.0
    %598 = vmatpush1.msra.mxu0 %v537
    %599 = vmatprep.subr.mxu0 0.0
    %600 = vmatpush1.msra.mxu0 %v538
    %601 = vmatprep.subr.mxu0 0.0
    %602 = vmatpush1.msra.mxu0 %v539
    %603 = vmatprep.subr.mxu0 0.0
    %604 = vmatpush1.msra.mxu0 %v540
    %605 = vmatprep.mubr.f32.mxu0 %v501
    %606 = vmatmul.mubr.f32.gmra.mrb[0].mxu0 %v500
    %v607 = vpop.f32.mrb[0].mxu0
    %v608 = vadd.f32 0.0, %v607
    %v609 = vpop.f32.mrb[0].mxu0
    %610 = vmatprep.mubr.f32.mxu0 %v503
    %611 = vmatmul.mubr.f32.gmra.mrb[0].mxu0 %v502
    %v612 = vpop.f32.mrb[0].mxu0
    %v613 = vadd.f32 0.0, %v612
    %v614 = vpop.f32.mrb[0].mxu0
    %615 = vmatprep.mubr.f32.mxu0 %v505
    %616 = vmatmul.mubr.f32.gmra.mrb[0].mxu0 %v504
    %v617 = vpop.f32.mrb[0].mxu0
    %v618 = vadd.f32 0.0, %v617
    %v619 = vpop.f32.mrb[0].mxu0
    %620 = vmatprep.mubr.f32.mxu0 %v507
    %621 = vmatmul.mubr.f32.gmra.mrb[0].mxu0 %v506
    %v622 = vpop.f32.mrb[0].mxu0
    %v623 = vadd.f32 0.0, %v622
    %v624 = vpop.f32.mrb[0].mxu0
    %625 = vdwg.mxu0
    %v626 = vadd.f32 %v608, %v613
    %v627 = vadd.f32 %v626, %v618
    %v628 = vadd.f32 %v627, %v623
    %v629 = vrot.slane %v628, 4
    %v630 = vadd.f32 %v628, %v629
    %v631 = vrot.slane %v630, 2
    %v632 = vadd.f32 %v630, %v631
    %v633 = vrot.slane %v632, 1
    %v634 = vadd.f32 %v632, %v633
    %v635 = vmul.f32 %v634, 0.033333335
    %v636 = vmul.f32 %v608, %v608
    %v637 = vmul.f32 %v613, %v613
    %v638 = vmul.f32 %v618, %v618
    %v639 = vmul.f32 %v623, %v623
    %v640 = vadd.f32 %v636, %v637
    %v641 = vadd.f32 %v640, %v638
    %v642 = vadd.f32 %v641, %v639
    %v643 = vrot.slane %v642, 4
    %v644 = vadd.f32 %v642, %v643
    %v645 = vrot.slane %v644, 2
    %v646 = vadd.f32 %v644, %v645
    %v647 = vrot.slane %v646, 1
    %v648 = vadd.f32 %v646, %v647
    %v649 = vmul.f32 %v648, 0.033333335
    %v650 = vmul.f32 %v635, %v635
    %v651 = vsub.f32 %v649, %v650
    %v652 = vmax.f32 %v651, 0.0
    %s653 = scalar_lea.vmem %s4, 1
    %v654 = vld [vmem:[%s653] sm:$0x1]
    %v655 = vadd.f32 %v652, 1e-05
    %v656 = vrsqrt.pop %v655
    %v657 = vmul.f32 %v654, %v656
    %s658 = scalar_lea.vmem %s5, 1
    %v659 = vld [vmem:[%s658] sm:$0x1]
    %v660 = vmul.f32 %v635, %v657
    %v661 = vsub.f32 %v659, %v660
    %v663 = vlaneseq
    %v664 = vshrl.u32 %v663, 7
    %v665 = vsub.s32 0, %v664
    %v666 = vrot.slane %v657, %v665
    %v668 = vmul.f32 %v608, %v666
    %v669 = vmul.f32 %v613, %v666
    %v670 = vmul.f32 %v618, %v666
    %v671 = vmul.f32 %v623, %v666
    %v673 = vlaneseq
    %v674 = vshrl.u32 %v673, 7
    %v675 = vsub.s32 0, %v674
    %v676 = vrot.slane %v661, %v675
    %v678 = vadd.f32 %v668, %v676
    %v679 = vadd.f32 %v669, %v676
    %v680 = vadd.f32 %v670, %v676
    %v681 = vadd.f32 %v671, %v676
    %v682 = vmax.f32 %v678, 0.0
    %v683 = vmax.f32 %v679, 0.0
    %v684 = vmax.f32 %v680, 0.0
    %v685 = vmax.f32 %v681, 0.0
    %v686 = vmul.f32 %v682, %v78
    %v687 = vmul.f32 %v683, %v79
    %v688 = vmul.f32 %v684, %v80
    %v689 = vmul.f32 %v685, %v81
    %690 = vst [vmem:[#allocation2 + $0x8] sm:$0xff] %v686
    %691 = vst [vmem:[#allocation2 + $0x18] sm:$0xff] %v687
    %692 = vst [vmem:[#allocation2 + $0x28] sm:$0xff] %v688
    %693 = vst [vmem:[#allocation2 + $0x38] sm:$0xff] %v689
    %v694 = vld [vmem:[#allocation2 + $0x8] sm:$0xff]
    %v695 = vld [vmem:[#allocation2 + $0x18] sm:$0xff]
    %v696 = vld [vmem:[#allocation2 + $0x28] sm:$0xff]
    %v697 = vld [vmem:[#allocation2 + $0x38] sm:$0xff]
    %v698 = vld [vmem:[#allocation3] sm:$0xff]
    %v699 = vld [vmem:[#allocation3 + $0x8] sm:$0xff]
    %v700 = vld [vmem:[#allocation3 + $0x10] sm:$0xff]
    %v701 = vld [vmem:[#allocation3 + $0x18] sm:$0xff]
    %v703 = vsel %vm98, %v698, 0
    %v706 = vsel %vm98, %v699, 0
    %v709 = vsel %vm98, %v700, 0
    %v712 = vsel %vm98, %v701, 0
    %714 = vmatprep.subr.mxu0 0.0
    %715 = vmatpush1.msra.mxu0 %v694
    %716 = vmatprep.subr.mxu0 0.0
    %717 = vmatpush1.msra.mxu0 %v695
    %718 = vmatprep.subr.mxu0 0.0
    %719 = vmatpush1.msra.mxu0 %v696
    %720 = vmatprep.subr.mxu0 0.0
    %721 = vmatpush1.msra.mxu0 %v697
    %722 = vmatprep.subr.mxu0 0.0
    %723 = vmatpush1.msra.mxu0 0.0
    %724 = vmatprep.subr.mxu0 0.0
    %725 = vmatpush1.msra.mxu0 0.0
    %726 = vmatprep.subr.mxu0 0.0
    %727 = vmatpush1.msra.mxu0 0.0
    %728 = vmatprep.subr.mxu0 0.0
    %729 = vmatpush1.msra.mxu0 0.0
    %730 = vmatprep.subr.mxu0 0.0
    %731 = vmatpush1.msra.mxu0 0.0
    %732 = vmatprep.subr.mxu0 0.0
    %733 = vmatpush1.msra.mxu0 0.0
    %734 = vmatprep.subr.mxu0 0.0
    %735 = vmatpush1.msra.mxu0 0.0
    %736 = vmatprep.subr.mxu0 0.0
    %737 = vmatpush1.msra.mxu0 0.0
    %738 = vmatprep.subr.mxu0 0.0
    %739 = vmatpush1.msra.mxu0 0.0
    %740 = vmatprep.subr.mxu0 0.0
    %741 = vmatpush1.msra.mxu0 0.0
    %742 = vmatprep.subr.mxu0 0.0
    %743 = vmatpush1.msra.mxu0 0.0
    %744 = vmatprep.subr.mxu0 0.0
    %745 = vmatpush1.msra.mxu0 0.0
    %746 = vmatprep.subr.mxu0 0.0
    %747 = vmatpush1.msra.mxu0 0.0
    %748 = vmatprep.subr.mxu0 0.0
    %749 = vmatpush1.msra.mxu0 0.0
    %750 = vmatprep.subr.mxu0 0.0
    %751 = vmatpush1.msra.mxu0 0.0
    %752 = vmatprep.subr.mxu0 0.0
    %753 = vmatpush1.msra.mxu0 0.0
    %754 = vmatprep.subr.mxu0 0.0
    %755 = vmatpush1.msra.mxu0 0.0
    %756 = vmatprep.subr.mxu0 0.0
    %757 = vmatpush1.msra.mxu0 0.0
    %758 = vmatprep.subr.mxu0 0.0
    %759 = vmatpush1.msra.mxu0 0.0
    %760 = vmatprep.subr.mxu0 0.0
    %761 = vmatpush1.msra.mxu0 0.0
    %762 = vmatprep.subr.mxu0 0.0
    %763 = vmatpush1.msra.mxu0 0.0
    %764 = vmatprep.subr.mxu0 0.0
    %765 = vmatpush1.msra.mxu0 0.0
    %766 = vmatprep.subr.mxu0 0.0
    %767 = vmatpush1.msra.mxu0 0.0
    %768 = vmatprep.subr.mxu0 0.0
    %769 = vmatpush1.msra.mxu0 0.0
    %770 = vmatprep.subr.mxu0 0.0
    %771 = vmatpush1.msra.mxu0 0.0
    %772 = vmatprep.subr.mxu0 0.0
    %773 = vmatpush1.msra.mxu0 0.0
    %774 = vmatprep.subr.mxu0 0.0
    %775 = vmatpush1.msra.mxu0 0.0
    %776 = vmatprep.subr.mxu0 0.0
    %777 = vmatpush1.msra.mxu0 0.0
    %778 = vmatprep.mubr.f32.mxu0 0.0
    %779 = vmatmul.mubr.f32.gmra.mrb[0].mxu0 %v703
    %v780 = vpop.f32.mrb[0].mxu0
    %v781 = vadd.f32 0.0, %v780
    %v782 = vpop.f32.mrb[0].mxu0
    %783 = vmatprep.mubr.f32.mxu0 0.0
    %784 = vmatmul.mubr.f32.gmra.mrb[0].mxu0 %v706
    %v785 = vpop.f32.mrb[0].mxu0
    %v786 = vadd.f32 0.0, %v785
    %v787 = vpop.f32.mrb[0].mxu0
    %788 = vmatprep.mubr.f32.mxu0 0.0
    %789 = vmatmul.mubr.f32.gmra.mrb[0].mxu0 %v709
    %v790 = vpop.f32.mrb[0].mxu0
    %v791 = vadd.f32 0.0, %v790
    %v792 = vpop.f32.mrb[0].mxu0
    %793 = vmatprep.mubr.f32.mxu0 0.0
    %794 = vmatmul.mubr.f32.gmra.mrb[0].mxu0 %v712
    %v795 = vpop.f32.mrb[0].mxu0
    %v796 = vadd.f32 0.0, %v795
    %v797 = vpop.f32.mrb[0].mxu0
    %798 = vdwg.mxu0
    %799 = vst [vmem:[#allocation2] sm:$0xff] %v781
    %800 = vst [vmem:[#allocation2 + $0x10] sm:$0xff] %v786
    %801 = vst [vmem:[#allocation2 + $0x20] sm:$0xff] %v791
    %802 = vst [vmem:[#allocation2 + $0x30] sm:$0xff] %v796
    %v803 = vld [vmem:[#allocation2] sm:$0xff]
    %v804 = vld [vmem:[#allocation2 + $0x8] sm:$0xff]
    %v805 = vld [vmem:[#allocation2 + $0x10] sm:$0xff]
    %v806 = vld [vmem:[#allocation2 + $0x18] sm:$0xff]
    %v807 = vld [vmem:[#allocation2 + $0x20] sm:$0xff]
    %v808 = vld [vmem:[#allocation2 + $0x28] sm:$0xff]
    %v809 = vld [vmem:[#allocation2 + $0x30] sm:$0xff]
    %v810 = vld [vmem:[#allocation2 + $0x38] sm:$0xff]
    %s811 = scalar_lea.vmem [#allocation8], 512
    %v812 = vld [vmem:[%s811] sm:$0xff]
    %v813 = vld [vmem:[%s811 + $0x8] sm:$0xff]
    %v814 = vld [vmem:[%s811 + $0x10] sm:$0xff]
    %v815 = vld [vmem:[%s811 + $0x18] sm:$0xff]
    %v816 = vld [vmem:[%s811 + $0x20] sm:$0xff]
    %v817 = vld [vmem:[%s811 + $0x28] sm:$0xff]
    %v818 = vld [vmem:[%s811 + $0x30] sm:$0xff]
    %v819 = vld [vmem:[%s811 + $0x38] sm:$0xff]
    %v820 = vld [vmem:[%s811 + $0x40] sm:$0xff]
    %v821 = vld [vmem:[%s811 + $0x48] sm:$0xff]
    %v822 = vld [vmem:[%s811 + $0x50] sm:$0xff]
    %v823 = vld [vmem:[%s811 + $0x58] sm:$0xff]
    %v824 = vld [vmem:[%s811 + $0x60] sm:$0xff]
    %v825 = vld [vmem:[%s811 + $0x68] sm:$0xff]
    %v826 = vld [vmem:[%s811 + $0x70] sm:$0xff]
    %v827 = vld [vmem:[%s811 + $0x78] sm:$0xff]
    %v828 = vld [vmem:[%s811 + $0x80] sm:$0xff]
    %v829 = vld [vmem:[%s811 + $0x88] sm:$0xff]
    %v830 = vld [vmem:[%s811 + $0x90] sm:$0xff]
    %v831 = vld [vmem:[%s811 + $0x98] sm:$0xff]
    %v832 = vld [vmem:[%s811 + $0xa0] sm:$0xff]
    %v833 = vld [vmem:[%s811 + $0xa8] sm:$0xff]
    %v834 = vld [vmem:[%s811 + $0xb0] sm:$0xff]
    %v835 = vld [vmem:[%s811 + $0xb8] sm:$0xff]
    %v836 = vld [vmem:[%s811 + $0xc0] sm:$0xff]
    %v837 = vld [vmem:[%s811 + $0xc8] sm:$0xff]
    %v838 = vld [vmem:[%s811 + $0xd0] sm:$0xff]
    %v839 = vld [vmem:[%s811 + $0xd8] sm:$0xff]
    %v840 = vld [vmem:[%s811 + $0xe0] sm:$0xff]
    %v841 = vld [vmem:[%s811 + $0xe8] sm:$0xff]
    %v842 = vld [vmem:[%s811 + $0xf0] sm:$0xff]
    %v843 = vld [vmem:[%s811 + $0xf8] sm:$0xff]
    %v844 = vld [vmem:[%s3] sm:$0x1]
    %v846 = vlaneseq
    %v847 = vshrl.u32 %v846, 7
    %v848 = vsub.s32 0, %v847
    %v849 = vrot.slane %v844, %v848
    %851 = vmatprep.subr.mxu0 0.0
    %852 = vmatpush1.msra.mxu0 %v812
    %853 = vmatprep.subr.mxu0 0.0
    %854 = vmatpush1.msra.mxu0 %v813
    %855 = vmatprep.subr.mxu0 0.0
    %856 = vmatpush1.msra.mxu0 %v814
    %857 = vmatprep.subr.mxu0 0.0
    %858 = vmatpush1.msra.mxu0 %v815
    %859 = vmatprep.subr.mxu0 0.0
    %860 = vmatpush1.msra.mxu0 %v816
    %861 = vmatprep.subr.mxu0 0.0
    %862 = vmatpush1.msra.mxu0 %v817
    %863 = vmatprep.subr.mxu0 0.0
    %864 = vmatpush1.msra.mxu0 %v818
    %865 = vmatprep.subr.mxu0 0.0
    %866 = vmatpush1.msra.mxu0 %v819
    %867 = vmatprep.subr.mxu0 0.0
    %868 = vmatpush1.msra.mxu0 %v820
    %869 = vmatprep.subr.mxu0 0.0
    %870 = vmatpush1.msra.mxu0 %v821
    %871 = vmatprep.subr.mxu0 0.0
    %872 = vmatpush1.msra.mxu0 %v822
    %873 = vmatprep.subr.mxu0 0.0
    %874 = vmatpush1.msra.mxu0 %v823
    %875 = vmatprep.subr.mxu0 0.0
    %876 = vmatpush1.msra.mxu0 %v824
    %877 = vmatprep.subr.mxu0 0.0
    %878 = vmatpush1.msra.mxu0 %v825
    %879 = vmatprep.subr.mxu0 0.0
    %880 = vmatpush1.msra.mxu0 %v826
    %881 = vmatprep.subr.mxu0 0.0
    %882 = vmatpush1.msra.mxu0 %v827
    %883 = vmatprep.subr.mxu0 0.0
    %884 = vmatpush1.msra.mxu0 %v828
    %885 = vmatprep.subr.mxu0 0.0
    %886 = vmatpush1.msra.mxu0 %v829
    %887 = vmatprep.subr.mxu0 0.0
    %888 = vmatpush1.msra.mxu0 %v830
    %889 = vmatprep.subr.mxu0 0.0
    %890 = vmatpush1.msra.mxu0 %v831
    %891 = vmatprep.subr.mxu0 0.0
    %892 = vmatpush1.msra.mxu0 %v832
    %893 = vmatprep.subr.mxu0 0.0
    %894 = vmatpush1.msra.mxu0 %v833
    %895 = vmatprep.subr.mxu0 0.0
    %896 = vmatpush1.msra.mxu0 %v834
    %897 = vmatprep.subr.mxu0 0.0
    %898 = vmatpush1.msra.mxu0 %v835
    %899 = vmatprep.subr.mxu0 0.0
    %900 = vmatpush1.msra.mxu0 %v836
    %901 = vmatprep.subr.mxu0 0.0
    %902 = vmatpush1.msra.mxu0 %v837
    %903 = vmatprep.subr.mxu0 0.0
    %904 = vmatpush1.msra.mxu0 %v838
    %905 = vmatprep.subr.mxu0 0.0
    %906 = vmatpush1.msra.mxu0 %v839
    %907 = vmatprep.subr.mxu0 0.0
    %908 = vmatpush1.msra.mxu0 %v840
    %909 = vmatprep.subr.mxu0 0.0
    %910 = vmatpush1.msra.mxu0 %v841
    %911 = vmatprep.subr.mxu0 0.0
    %912 = vmatpush1.msra.mxu0 %v842
    %913 = vmatprep.subr.mxu0 0.0
    %914 = vmatpush1.msra.mxu0 %v843
    %915 = vmatprep.mubr.f32.mxu0 %v804
    %916 = vmatmul.mubr.f32.gmra.mrb[0].mxu0 %v803
    %v917 = vpop.f32.mrb[0].mxu0
    %v918 = vadd.f32 %v849, %v917
    %v919 = vpop.f32.mrb[0].mxu0
    %920 = vmatprep.mubr.f32.mxu0 %v806
    %921 = vmatmul.mubr.f32.gmra.mrb[0].mxu0 %v805
    %v922 = vpop.f32.mrb[0].mxu0
    %v923 = vadd.f32 %v849, %v922
    %v924 = vpop.f32.mrb[0].mxu0
    %925 = vmatprep.mubr.f32.mxu0 %v808
    %926 = vmatmul.mubr.f32.gmra.mrb[0].mxu0 %v807
    %v927 = vpop.f32.mrb[0].mxu0
    %v928 = vadd.f32 %v849, %v927
    %v929 = vpop.f32.mrb[0].mxu0
    %930 = vmatprep.mubr.f32.mxu0 %v810
    %931 = vmatmul.mubr.f32.gmra.mrb[0].mxu0 %v809
    %v932 = vpop.f32.mrb[0].mxu0
    %v933 = vadd.f32 %v849, %v932
    %v934 = vpop.f32.mrb[0].mxu0
    %935 = vdwg.mxu0
    %936 = vst [vmem:[#allocation9] sm:$0xff] %v918
    %937 = vst [vmem:[#allocation9 + $0x8] sm:$0xff] %v923
    %938 = vst [vmem:[#allocation9 + $0x10] sm:$0xff] %v928
    %939 = vst [vmem:[#allocation9 + $0x18] sm:$0xff] %v933
    // Predicated region
    $region38: #{tpu_custom_call.1} parent=1 // pred_check
      _
    $region39: #{tpu_custom_call.1} parent=1 // pred_check_branch
      %941 = sbr.rel (0) target = $region41
    $region40: #{tpu_custom_call.1} parent=1 // pred_region
      %s943 = ssub.s32 512, 512
      %944 = vsyncadd [#allocation5], %s943
      %s945 = sshll.u32 [#allocation9], 4
      %s946 = int_to_ptr.vmem [resolvable:$true] %s945
      %951 = dma.vmem_to_hbm [thread:$0]  %s946, 512, %s6, [#allocation5], 128, 128, 8
    $region41: #{tpu_custom_call.1} parent=1 // pred_fallthru
      _
    // Predicated region
    $region42: #{tpu_custom_call.1} parent=1 // pred_check
      _
    $region43: #{tpu_custom_call.1} parent=1 // pred_check_branch
      %953 = sbr.rel (0) target = $region45
    $region44: #{tpu_custom_call.1} parent=1 // pred_region
      %954 = dma.done [#allocation5], 512
    $region45: #{tpu_custom_call.1} parent=1 // pred_fallthru
      _
    %955 = vsyncpa [#allocation4], 1
    %956 = vsyncpa [#allocation7], 1
    %957 = vsyncpa [#allocation5], 1

// kernel: tpu_custom_call.1
$region0: #{tpu_custom_call.1}
  #allocation0 [shape = 'u32[]', space=smem, size = 0x4, offset = 0x4, fixed_abs, tag = 'smem constant byte address 0x4 - core index']
  #allocation1 [shape = 'u32[144,128]{1,0:T(1,128)}', space=vmem, size = 0x12000, scoped, tag = 'internal scratch']
  #allocation2 [shape = 'f32[32,256]{1,0:T(8,128)}', space=vmem, size = 0x8000, scoped, tag = 'scratch operand']
  %s0 = inlined_call_operand.hbm [shape: f32[32,32], index: 0, kind: input, shape index: {}]
  %s1 = inlined_call_operand.hbm [shape: f32[32,128], index: 1, kind: input, shape index: {}]
  %s2 = inlined_call_operand.hbm [shape: f32[1,3,256,128], index: 2, kind: input, shape index: {}]
  %s3 = inlined_call_operand.vmem [shape: f32[1,1,128], index: 3, kind: input, shape index: {}]
  %s4 = inlined_call_operand.vmem [shape: f32[1,2,1,128], index: 4, kind: input, shape index: {}]
  %s5 = inlined_call_operand.vmem [shape: f32[1,2,1,128], index: 5, kind: input, shape index: {}]
  %s6 = inlined_call_operand.hbm [shape: f32[1,32,128], index: 6, kind: output, shape index: {}]
  %s7 = sld [smem:[#allocation0]]
  $region46: #{tpu_custom_call.1} parent=0
    _
  %s9 = ssub.s32 1, %s7
  %s10 = scalar_select 0, %s9, %s7
  $region1: #{tpu_custom_call.1} parent=0
    #allocation3 [shape = 'u8[16384]{0}', space=vmem, size = 0x4000, scoped, tag = 'input window, operand 0, single buffered']
    #allocation4 [shape = 's32[1]{0}', space=sflag, size = 0x4, scoped, tag = 'scoped memory for tpu_custom_call.1']
    #allocation5 [shape = 's32[1]{0}', space=sflag, size = 0x4, scoped, tag = 'scoped memory for tpu_custom_call.1']
    #allocation6 [shape = 'u8[16384]{0}', space=vmem, size = 0x4000, scoped, tag = 'input window, operand 1, single buffered']
    #allocation7 [shape = 's32[1]{0}', space=sflag, size = 0x4, scoped, tag = 'scoped memory for tpu_custom_call.1']
    #allocation8 [shape = 'u8[393216]{0}', space=vmem, size = 0x60000, scoped, tag = 'input window, operand 2, single buffered']
    #allocation9 [shape = 'u8[16384]{0}', space=vmem, size = 0x4000, scoped, tag = 'output window, operand 0, single buffered']
    %11 = vsyncpa [#allocation4], 0
    %12 = vsyncpa [#allocation7], 0
    %13 = vsyncpa [#allocation5], 0
    // Predicated region
    $region2: #{tpu_custom_call.1} parent=1 // pred_check
      _
    $region3: #{tpu_custom_call.1} parent=1 // pred_check_branch
      %15 = sbr.rel (0) target = $region5
    $region4: #{tpu_custom_call.1} parent=1 // pred_region
      %s17 = ssub.s32 512, 512
      %18 = vsyncadd [#allocation4], %s17
      %s19 = sshll.u32 [#allocation3], 4
      %s20 = int_to_ptr.vmem [resolvable:$true] %s19
      %25 = dma.hbm_to_vmem [thread:$0]  %s0, 512, %s20, [#allocation4], 128, 128, 8
    $region5: #{tpu_custom_call.1} parent=1 // pred_fallthru
      _
    // Predicated region
    $region6: #{tpu_custom_call.1} parent=1 // pred_check
      _
    $region7: #{tpu_custom_call.1} parent=1 // pred_check_branch
      %27 = sbr.rel (0) target = $region9
    $region8: #{tpu_custom_call.1} parent=1 // pred_region
      %s29 = ssub.s32 512, 512
      %30 = vsyncadd [#allocation7], %s29
      %s31 = sshll.u32 [#allocation6], 4
      %s32 = int_to_ptr.vmem [resolvable:$true] %s31
      %37 = dma.hbm_to_vmem [thread:$0]  %s1, 512, %s32, [#allocation7], 128, 128, 8
    $region9: #{tpu_custom_call.1} parent=1 // pred_fallthru
      _
    // Predicated region
    $region10: #{tpu_custom_call.1} parent=1 // pred_check
      _
    $region11: #{tpu_custom_call.1} parent=1 // pred_check_branch
      %39 = sbr.rel (0) target = $region13
    $region12: #{tpu_custom_call.1} parent=1 // pred_region
      %s41 = ssub.s32 12288, 12288
      %42 = vsyncadd [#allocation7], %s41
      %s43 = sshll.u32 [#allocation8], 4
      %s44 = int_to_ptr.vmem [resolvable:$true] %s43
      %49 = dma.hbm_to_vmem [thread:$0]  %s2, 12288, %s44, [#allocation7], 128, 128, 8
    $region13: #{tpu_custom_call.1} parent=1 // pred_fallthru
      _
    // Predicated region
    $region14: #{tpu_custom_call.1} parent=1 // pred_check
      _
    $region15: #{tpu_custom_call.1} parent=1 // pred_check_branch
      %51 = sbr.rel (0) target = $region17
    $region16: #{tpu_custom_call.1} parent=1 // pred_region
      _
    $region17: #{tpu_custom_call.1} parent=1 // pred_fallthru
      _
    // Predicated region
    $region18: #{tpu_custom_call.1} parent=1 // pred_check
      _
    $region19: #{tpu_custom_call.1} parent=1 // pred_check_branch
      %53 = sbr.rel (0) target = $region21
    $region20: #{tpu_custom_call.1} parent=1 // pred_region
      _
    $region21: #{tpu_custom_call.1} parent=1 // pred_fallthru
      _
    // Predicated region
    $region22: #{tpu_custom_call.1} parent=1 // pred_check
      _
    $region23: #{tpu_custom_call.1} parent=1 // pred_check_branch
      %55 = sbr.rel (0) target = $region25
    $region24: #{tpu_custom_call.1} parent=1 // pred_region
      _
    $region25: #{tpu_custom_call.1} parent=1 // pred_fallthru
      _
    // Predicated region
    $region26: #{tpu_custom_call.1} parent=1 // pred_check
      _
    $region27: #{tpu_custom_call.1} parent=1 // pred_check_branch
      %57 = sbr.rel (0) target = $region29
    $region28: #{tpu_custom_call.1} parent=1 // pred_region
      %58 = dma.done [#allocation4], 512
    $region29: #{tpu_custom_call.1} parent=1 // pred_fallthru
      _
    // Predicated region
    $region30: #{tpu_custom_call.1} parent=1 // pred_check
      _
    $region31: #{tpu_custom_call.1} parent=1 // pred_check_branch
      %60 = sbr.rel (0) target = $region33
    $region32: #{tpu_custom_call.1} parent=1 // pred_region
      %61 = dma.done [#allocation7], 512
    $region33: #{tpu_custom_call.1} parent=1 // pred_fallthru
      _
    // Predicated region
    $region34: #{tpu_custom_call.1} parent=1 // pred_check
      _
    $region35: #{tpu_custom_call.1} parent=1 // pred_check_branch
      %63 = sbr.rel (0) target = $region37
    $region36: #{tpu_custom_call.1} parent=1 // pred_region
      %64 = dma.done [#allocation7], 12288
    $region37: #{tpu_custom_call.1} parent=1 // pred_fallthru
      _
    %v65 = vlaneseq
    %v66 = vshrl.u32 %v65, 7
    %v67 = vadd.s32 %v66, 8
    %v68 = vadd.s32 %v66, 16
    %v69 = vadd.s32 %v66, 24
    %vm70 = vcmp.lt.s32.totalorder %v66, 30
    %vm71 = vcmp.lt.s32.totalorder %v67, 30
    %vm72 = vcmp.lt.s32.totalorder %v68, 30
    %vm73 = vcmp.lt.s32.totalorder %v69, 30
    %v74 = vsel %vm70, 1, 0
    %v75 = vsel %vm71, 1, 0
    %v76 = vsel %vm72, 1, 0
    %v77 = vsel %vm73, 1, 0
    %v78 = vcvt.s32.f32 %v74
    %v79 = vcvt.s32.f32 %v75
    %v80 = vcvt.s32.f32 %v76
    %v81 = vcvt.s32.f32 %v77
    %v82 = vld [vmem:[#allocation6] sm:$0xff]
    %v83 = vld [vmem:[#allocation6 + $0x8] sm:$0xff]
    %v84 = vld [vmem:[#allocation6 + $0x10] sm:$0xff]
    %v85 = vld [vmem:[#allocation6 + $0x18] sm:$0xff]
    %86 = vst [vmem:[#allocation2 + $0x8] sm:$0xff] %v82
    %87 = vst [vmem:[#allocation2 + $0x18] sm:$0xff] %v83
    %88 = vst [vmem:[#allocation2 + $0x28] sm:$0xff] %v84
    %89 = vst [vmem:[#allocation2 + $0x38] sm:$0xff] %v85
    %v90 = vld [vmem:[#allocation2 + $0x8] sm:$0xff]
    %v91 = vld [vmem:[#allocation2 + $0x18] sm:$0xff]
    %v92 = vld [vmem:[#allocation2 + $0x28] sm:$0xff]
    %v93 = vld [vmem:[#allocation2 + $0x38] sm:$0xff]
    %v94 = vld [vmem:[#allocation3] sm:$0xff]
    %v95 = vld [vmem:[#allocation3 + $0x8] sm:$0xff]
    %v96 = vld [vmem:[#allocation3 + $0x10] sm:$0xff]
    %v97 = vld [vmem:[#allocation3 + $0x18] sm:$0xff]
    %vm98 = vcmask 261120
    %v100 = vsel %vm98, %v94, 0
    %v103 = vsel %vm98, %v95, 0
    %v106 = vsel %vm98, %v96, 0
    %v109 = vsel %vm98, %v97, 0
    %111 = vmatprep.subr.mxu0 0.0
    %112 = vmatpush1.msra.mxu0 %v90
    %113 = vmatprep.subr.mxu0 0.0
    %114 = vmatpush1.msra.mxu0 %v91
    %115 = vmatprep.subr.mxu0 0.0
    %116 = vmatpush1.msra.mxu0 %v92
    %117 = vmatprep.subr.mxu0 0.0
    %118 = vmatpush1.msra.mxu0 %v93
    %119 = vmatprep.subr.mxu0 0.0
    %120 = vmatpush1.msra.mxu0 0.0
    %121 = vmatprep.subr.mxu0 0.0
    %122 = vmatpush1.msra.mxu0 0.0
    %123 = vmatprep.subr.mxu0 0.0
    %124 = vmatpush1.msra.mxu0 0.0
    %125 = vmatprep.subr.mxu0 0.0
    %126 = vmatpush1.msra.mxu0 0.0
    %127 = vmatprep.subr.mxu0 0.0
    %128 = vmatpush1.msra.mxu0 0.0
    %129 = vmatprep.subr.mxu0 0.0
    %130 = vmatpush1.msra.mxu0 0.0
    %131 = vmatprep.subr.mxu0 0.0
    %132 = vmatpush1.msra.mxu0 0.0
    %133 = vmatprep.subr.mxu0 0.0
    %134 = vmatpush1.msra.mxu0 0.0
    %135 = vmatprep.subr.mxu0 0.0
    %136 = vmatpush1.msra.mxu0 0.0
    %137 = vmatprep.subr.mxu0 0.0
    %138 = vmatpush1.msra.mxu0 0.0
    %139 = vmatprep.subr.mxu0 0.0
    %140 = vmatpush1.msra.mxu0 0.0
    %141 = vmatprep.subr.mxu0 0.0
    %142 = vmatpush1.msra.mxu0 0.0
    %143 = vmatprep.subr.mxu0 0.0
    %144 = vmatpush1.msra.mxu0 0.0
    %145 = vmatprep.subr.mxu0 0.0
    %146 = vmatpush1.msra.mxu0 0.0
    %147 = vmatprep.subr.mxu0 0.0
    %148 = vmatpush1.msra.mxu0 0.0
    %149 = vmatprep.subr.mxu0 0.0
    %150 = vmatpush1.msra.mxu0 0.0
    %151 = vmatprep.subr.mxu0 0.0
    %152 = vmatpush1.msra.mxu0 0.0
    %153 = vmatprep.subr.mxu0 0.0
    %154 = vmatpush1.msra.mxu0 0.0
    %155 = vmatprep.subr.mxu0 0.0
    %156 = vmatpush1.msra.mxu0 0.0
    %157 = vmatprep.subr.mxu0 0.0
    %158 = vmatpush1.msra.mxu0 0.0
    %159 = vmatprep.subr.mxu0 0.0
    %160 = vmatpush1.msra.mxu0 0.0
    %161 = vmatprep.subr.mxu0 0.0
    %162 = vmatpush1.msra.mxu0 0.0
    %163 = vmatprep.subr.mxu0 0.0
    %164 = vmatpush1.msra.mxu0 0.0
    %165 = vmatprep.subr.mxu0 0.0
    %166 = vmatpush1.msra.mxu0 0.0
    %167 = vmatprep.subr.mxu0 0.0
    %168 = vmatpush1.msra.mxu0 0.0
    %169 = vmatprep.subr.mxu0 0.0
    %170 = vmatpush1.msra.mxu0 0.0
    %171 = vmatprep.subr.mxu0 0.0
    %172 = vmatpush1.msra.mxu0 0.0
    %173 = vmatprep.subr.mxu0 0.0
    %174 = vmatpush1.msra.mxu0 0.0
    %175 = vmatprep.mubr.f32.mxu0 0.0
    %176 = vmatmul.mubr.f32.gmra.mrb[0].mxu0 %v100
    %v177 = vpop.f32.mrb[0].mxu0
    %v178 = vadd.f32 0.0, %v177
    %v179 = vpop.f32.mrb[0].mxu0
    %180 = vmatprep.mubr.f32.mxu0 0.0
    %181 = vmatmul.mubr.f32.gmra.mrb[0].mxu0 %v103
    %v182 = vpop.f32.mrb[0].mxu0
    %v183 = vadd.f32 0.0, %v182
    %v184 = vpop.f32.mrb[0].mxu0
    %185 = vmatprep.mubr.f32.mxu0 0.0
    %186 = vmatmul.mubr.f32.gmra.mrb[0].mxu0 %v106
    %v187 = vpop.f32.mrb[0].mxu0
    %v188 = vadd.f32 0.0, %v187
    %v189 = vpop.f32.mrb[0].mxu0
    %190 = vmatprep.mubr.f32.mxu0 0.0
    %191 = vmatmul.mubr.f32.gmra.mrb[0].mxu0 %v109
    %v192 = vpop.f32.mrb[0].mxu0
    %v193 = vadd.f32 0.0, %v192
    %v194 = vpop.f32.mrb[0].mxu0
    %195 = vdwg.mxu0
    %196 = vst [vmem:[#allocation2] sm:$0xff] %v178
    %197 = vst [vmem:[#allocation2 + $0x10] sm:$0xff] %v183
    %198 = vst [vmem:[#allocation2 + $0x20] sm:$0xff] %v188
    %199 = vst [vmem:[#allocation2 + $0x30] sm:$0xff] %v193
    %v200 = vld [vmem:[#allocation2] sm:$0xff]
    %v201 = vld [vmem:[#allocation2 + $0x8] sm:$0xff]
    %v202 = vld [vmem:[#allocation2 + $0x10] sm:$0xff]
    %v203 = vld [vmem:[#allocation2 + $0x18] sm:$0xff]
    %v204 = vld [vmem:[#allocation2 + $0x20] sm:$0xff]
    %v205 = vld [vmem:[#allocation2 + $0x28] sm:$0xff]
    %v206 = vld [vmem:[#allocation2 + $0x30] sm:$0xff]
    %v207 = vld [vmem:[#allocation2 + $0x38] sm:$0xff]
    %v208 = vld [vmem:[#allocation8] sm:$0xff]
    %v209 = vld [vmem:[#allocation8 + $0x8] sm:$0xff]
    %v210 = vld [vmem:[#allocation8 + $0x10] sm:$0xff]
    %v211 = vld [vmem:[#allocation8 + $0x18] sm:$0xff]
    %v212 = vld [vmem:[#allocation8 + $0x20] sm:$0xff]
    %v213 = vld [vmem:[#allocation8 + $0x28] sm:$0xff]
    %v214 = vld [vmem:[#allocation8 + $0x30] sm:$0xff]
    %v215 = vld [vmem:[#allocation8 + $0x38] sm:$0xff]
    %v216 = vld [vmem:[#allocation8 + $0x40] sm:$0xff]
    %v217 = vld [vmem:[#allocation8 + $0x48] sm:$0xff]
    %v218 = vld [vmem:[#allocation8 + $0x50] sm:$0xff]
    %v219 = vld [vmem:[#allocation8 + $0x58] sm:$0xff]
    %v220 = vld [vmem:[#allocation8 + $0x60] sm:$0xff]
    %v221 = vld [vmem:[#allocation8 + $0x68] sm:$0xff]
    %v222 = vld [vmem:[#allocation8 + $0x70] sm:$0xff]
    %v223 = vld [vmem:[#allocation8 + $0x78] sm:$0xff]
    %v224 = vld [vmem:[#allocation8 + $0x80] sm:$0xff]
    %v225 = vld [vmem:[#allocation8 + $0x88] sm:$0xff]
    %v226 = vld [vmem:[#allocation8 + $0x90] sm:$0xff]
    %v227 = vld [vmem:[#allocation8 + $0x98] sm:$0xff]
    %v228 = vld [vmem:[#allocation8 + $0xa0] sm:$0xff]
    %v229 = vld [vmem:[#allocation8 + $0xa8] sm:$0xff]
    %v230 = vld [vmem:[#allocation8 + $0xb0] sm:$0xff]
    %v231 = vld [vmem:[#allocation8 + $0xb8] sm:$0xff]
    %v232 = vld [vmem:[#allocation8 + $0xc0] sm:$0xff]
    %v233 = vld [vmem:[#allocation8 + $0xc8] sm:$0xff]
    %v234 = vld [vmem:[#allocation8 + $0xd0] sm:$0xff]
    %v235 = vld [vmem:[#allocation8 + $0xd8] sm:$0xff]
    %v236 = vld [vmem:[#allocation8 + $0xe0] sm:$0xff]
    %v237 = vld [vmem:[#allocation8 + $0xe8] sm:$0xff]
    %v238 = vld [vmem:[#allocation8 + $0xf0] sm:$0xff]
    %v239 = vld [vmem:[#allocation8 + $0xf8] sm:$0xff]
    %240 = vmatprep.subr.mxu0 0.0
    %241 = vmatpush1.msra.mxu0 %v208
    %242 = vmatprep.subr.mxu0 0.0
    %243 = vmatpush1.msra.mxu0 %v209
    %244 = vmatprep.subr.mxu0 0.0
    %245 = vmatpush1.msra.mxu0 %v210
    %246 = vmatprep.subr.mxu0 0.0
    %247 = vmatpush1.msra.mxu0 %v211
    %248 = vmatprep.subr.mxu0 0.0
    %249 = vmatpush1.msra.mxu0 %v212
    %250 = vmatprep.subr.mxu0 0.0
    %251 = vmatpush1.msra.mxu0 %v213
    %252 = vmatprep.subr.mxu0 0.0
    %253 = vmatpush1.msra.mxu0 %v214
    %254 = vmatprep.subr.mxu0 0.0
    %255 = vmatpush1.msra.mxu0 %v215
    %256 = vmatprep.subr.mxu0 0.0
    %257 = vmatpush1.msra.mxu0 %v216
    %258 = vmatprep.subr.mxu0 0.0
    %259 = vmatpush1.msra.mxu0 %v217
    %260 = vmatprep.subr.mxu0 0.0
    %261 = vmatpush1.msra.mxu0 %v218
    %262 = vmatprep.subr.mxu0 0.0
    %263 = vmatpush1.msra.mxu0 %v219
    %264 = vmatprep.subr.mxu0 0.0
    %265 = vmatpush1.msra.mxu0 %v220
    %266 = vmatprep.subr.mxu0 0.0
    %267 = vmatpush1.msra.mxu0 %v221
    %268 = vmatprep.subr.mxu0 0.0
    %269 = vmatpush1.msra.mxu0 %v222
    %270 = vmatprep.subr.mxu0 0.0
    %271 = vmatpush1.msra.mxu0 %v223
    %272 = vmatprep.subr.mxu0 0.0
    %273 = vmatpush1.msra.mxu0 %v224
    %274 = vmatprep.subr.mxu0 0.0
    %275 = vmatpush1.msra.mxu0 %v225
    %276 = vmatprep.subr.mxu0 0.0
    %277 = vmatpush1.msra.mxu0 %v226
    %278 = vmatprep.subr.mxu0 0.0
    %279 = vmatpush1.msra.mxu0 %v227
    %280 = vmatprep.subr.mxu0 0.0
    %281 = vmatpush1.msra.mxu0 %v228
    %282 = vmatprep.subr.mxu0 0.0
    %283 = vmatpush1.msra.mxu0 %v229
    %284 = vmatprep.subr.mxu0 0.0
    %285 = vmatpush1.msra.mxu0 %v230
    %286 = vmatprep.subr.mxu0 0.0
    %287 = vmatpush1.msra.mxu0 %v231
    %288 = vmatprep.subr.mxu0 0.0
    %289 = vmatpush1.msra.mxu0 %v232
    %290 = vmatprep.subr.mxu0 0.0
    %291 = vmatpush1.msra.mxu0 %v233
    %292 = vmatprep.subr.mxu0 0.0
    %293 = vmatpush1.msra.mxu0 %v234
    %294 = vmatprep.subr.mxu0 0.0
    %295 = vmatpush1.msra.mxu0 %v235
    %296 = vmatprep.subr.mxu0 0.0
    %297 = vmatpush1.msra.mxu0 %v236
    %298 = vmatprep.subr.mxu0 0.0
    %299 = vmatpush1.msra.mxu0 %v237
    %300 = vmatprep.subr.mxu0 0.0
    %301 = vmatpush1.msra.mxu0 %v238
    %302 = vmatprep.subr.mxu0 0.0
    %303 = vmatpush1.msra.mxu0 %v239
    %304 = vmatprep.mubr.f32.mxu0 %v201
    %305 = vmatmul.mubr.f32.gmra.mrb[0].mxu0 %v200
    %v306 = vpop.f32.mrb[0].mxu0
    %v307 = vadd.f32 0.0, %v306
    %v308 = vpop.f32.mrb[0].mxu0
    %309 = vmatprep.mubr.f32.mxu0 %v203
    %310 = vmatmul.mubr.f32.gmra.mrb[0].mxu0 %v202
    %v311 = vpop.f32.mrb[0].mxu0
    %v312 = vadd.f32 0.0, %v311
    %v313 = vpop.f32.mrb[0].mxu0
    %314 = vmatprep.mubr.f32.mxu0 %v205
    %315 = vmatmul.mubr.f32.gmra.mrb[0].mxu0 %v204
    %v316 = vpop.f32.mrb[0].mxu0
    %v317 = vadd.f32 0.0, %v316
    %v318 = vpop.f32.mrb[0].mxu0
    %319 = vmatprep.mubr.f32.mxu0 %v207
    %320 = vmatmul.mubr.f32.gmra.mrb[0].mxu0 %v206
    %v321 = vpop.f32.mrb[0].mxu0
    %v322 = vadd.f32 0.0, %v321
    %v323 = vpop.f32.mrb[0].mxu0
    %324 = vdwg.mxu0
    %v325 = vadd.f32 %v307, %v312
    %v326 = vadd.f32 %v325, %v317
    %v327 = vadd.f32 %v326, %v322
    %v328 = vrot.slane %v327, 4
    %v329 = vadd.f32 %v327, %v328
    %v330 = vrot.slane %v329, 2
    %v331 = vadd.f32 %v329, %v330
    %v332 = vrot.slane %v331, 1
    %v333 = vadd.f32 %v331, %v332
    %v334 = vmul.f32 %v333, 0.033333335
    %v335 = vmul.f32 %v307, %v307
    %v336 = vmul.f32 %v312, %v312
    %v337 = vmul.f32 %v317, %v317
    %v338 = vmul.f32 %v322, %v322
    %v339 = vadd.f32 %v335, %v336
    %v340 = vadd.f32 %v339, %v337
    %v341 = vadd.f32 %v340, %v338
    %v342 = vrot.slane %v341, 4
    %v343 = vadd.f32 %v341, %v342
    %v344 = vrot.slane %v343, 2
    %v345 = vadd.f32 %v343, %v344
    %v346 = vrot.slane %v345, 1
    %v347 = vadd.f32 %v345, %v346
    %v348 = vmul.f32 %v347, 0.033333335
    %v349 = vmul.f32 %v334, %v334
    %v350 = vsub.f32 %v348, %v349
    %v351 = vmax.f32 %v350, 0.0
    %v352 = vld [vmem:[%s4] sm:$0x1]
    %v353 = vadd.f32 %v351, 1e-05
    %v354 = vrsqrt.pop %v353
    %v355 = vmul.f32 %v352, %v354
    %v356 = vld [vmem:[%s5] sm:$0x1]
    %v357 = vmul.f32 %v334, %v355
    %v358 = vsub.f32 %v356, %v357
    %v360 = vlaneseq
    %v361 = vshrl.u32 %v360, 7
    %v362 = vsub.s32 0, %v361
    %v363 = vrot.slane %v355, %v362
    %v365 = vmul.f32 %v307, %v363
    %v366 = vmul.f32 %v312, %v363
    %v367 = vmul.f32 %v317, %v363
    %v368 = vmul.f32 %v322, %v363
    %v370 = vlaneseq
    %v371 = vshrl.u32 %v370, 7
    %v372 = vsub.s32 0, %v371
    %v373 = vrot.slane %v358, %v372
    %v375 = vadd.f32 %v365, %v373
    %v376 = vadd.f32 %v366, %v373
    %v377 = vadd.f32 %v367, %v373
    %v378 = vadd.f32 %v368, %v373
    %v379 = vmax.f32 %v375, 0.0
    %v380 = vmax.f32 %v376, 0.0
    %v381 = vmax.f32 %v377, 0.0
    %v382 = vmax.f32 %v378, 0.0
    %v383 = vmul.f32 %v379, %v78
    %v384 = vmul.f32 %v380, %v79
    %v385 = vmul.f32 %v381, %v80
    %v386 = vmul.f32 %v382, %v81
    %387 = vst [vmem:[#allocation2 + $0x8] sm:$0xff] %v383
    %388 = vst [vmem:[#allocation2 + $0x18] sm:$0xff] %v384
    %389 = vst [vmem:[#allocation2 + $0x28] sm:$0xff] %v385
    %390 = vst [vmem:[#allocation2 + $0x38] sm:$0xff] %v386
    %v391 = vld [vmem:[#allocation2 + $0x8] sm:$0xff]
    %v392 = vld [vmem:[#allocation2 + $0x18] sm:$0xff]
    %v393 = vld [vmem:[#allocation2 + $0x28] sm:$0xff]
    %v394 = vld [vmem:[#allocation2 + $0x38] sm:$0xff]
    %v395 = vld [vmem:[#allocation3] sm:$0xff]
    %v396 = vld [vmem:[#allocation3 + $0x8] sm:$0xff]
    %v397 = vld [vmem:[#allocation3 + $0x10] sm:$0xff]
    %v398 = vld [vmem:[#allocation3 + $0x18] sm:$0xff]
    %v400 = vsel %vm98, %v395, 0
    %v403 = vsel %vm98, %v396, 0
    %v406 = vsel %vm98, %v397, 0
    %v409 = vsel %vm98, %v398, 0
    %411 = vmatprep.subr.mxu0 0.0
    %412 = vmatpush1.msra.mxu0 %v391
    %413 = vmatprep.subr.mxu0 0.0
    %414 = vmatpush1.msra.mxu0 %v392
    %415 = vmatprep.subr.mxu0 0.0
    %416 = vmatpush1.msra.mxu0 %v393
    %417 = vmatprep.subr.mxu0 0.0
    %418 = vmatpush1.msra.mxu0 %v394
    %419 = vmatprep.subr.mxu0 0.0
    %420 = vmatpush1.msra.mxu0 0.0
    %421 = vmatprep.subr.mxu0 0.0
    %422 = vmatpush1.msra.mxu0 0.0
    %423 = vmatprep.subr.mxu0 0.0
    %424 = vmatpush1.msra.mxu0 0.0
    %425 = vmatprep.subr.mxu0 0.0
    %426 = vmatpush1.msra.mxu0 0.0
    %427 = vmatprep.subr.mxu0 0.0
    %428 = vmatpush1.msra.mxu0 0.0
    %429 = vmatprep.subr.mxu0 0.0
    %430 = vmatpush1.msra.mxu0 0.0
    %431 = vmatprep.subr.mxu0 0.0
    %432 = vmatpush1.msra.mxu0 0.0
    %433 = vmatprep.subr.mxu0 0.0
    %434 = vmatpush1.msra.mxu0 0.0
    %435 = vmatprep.subr.mxu0 0.0
    %436 = vmatpush1.msra.mxu0 0.0
    %437 = vmatprep.subr.mxu0 0.0
    %438 = vmatpush1.msra.mxu0 0.0
    %439 = vmatprep.subr.mxu0 0.0
    %440 = vmatpush1.msra.mxu0 0.0
    %441 = vmatprep.subr.mxu0 0.0
    %442 = vmatpush1.msra.mxu0 0.0
    %443 = vmatprep.subr.mxu0 0.0
    %444 = vmatpush1.msra.mxu0 0.0
    %445 = vmatprep.subr.mxu0 0.0
    %446 = vmatpush1.msra.mxu0 0.0
    %447 = vmatprep.subr.mxu0 0.0
    %448 = vmatpush1.msra.mxu0 0.0
    %449 = vmatprep.subr.mxu0 0.0
    %450 = vmatpush1.msra.mxu0 0.0
    %451 = vmatprep.subr.mxu0 0.0
    %452 = vmatpush1.msra.mxu0 0.0
    %453 = vmatprep.subr.mxu0 0.0
    %454 = vmatpush1.msra.mxu0 0.0
    %455 = vmatprep.subr.mxu0 0.0
    %456 = vmatpush1.msra.mxu0 0.0
    %457 = vmatprep.subr.mxu0 0.0
    %458 = vmatpush1.msra.mxu0 0.0
    %459 = vmatprep.subr.mxu0 0.0
    %460 = vmatpush1.msra.mxu0 0.0
    %461 = vmatprep.subr.mxu0 0.0
    %462 = vmatpush1.msra.mxu0 0.0
    %463 = vmatprep.subr.mxu0 0.0
    %464 = vmatpush1.msra.mxu0 0.0
    %465 = vmatprep.subr.mxu0 0.0
    %466 = vmatpush1.msra.mxu0 0.0
    %467 = vmatprep.subr.mxu0 0.0
    %468 = vmatpush1.msra.mxu0 0.0
    %469 = vmatprep.subr.mxu0 0.0
    %470 = vmatpush1.msra.mxu0 0.0
    %471 = vmatprep.subr.mxu0 0.0
    %472 = vmatpush1.msra.mxu0 0.0
    %473 = vmatprep.subr.mxu0 0.0
    %474 = vmatpush1.msra.mxu0 0.0
    %475 = vmatprep.mubr.f32.mxu0 0.0
    %476 = vmatmul.mubr.f32.gmra.mrb[0].mxu0 %v400
    %v477 = vpop.f32.mrb[0].mxu0
    %v478 = vadd.f32 0.0, %v477
    %v479 = vpop.f32.mrb[0].mxu0
    %480 = vmatprep.mubr.f32.mxu0 0.0
    %481 = vmatmul.mubr.f32.gmra.mrb[0].mxu0 %v403
    %v482 = vpop.f32.mrb[0].mxu0
    %v483 = vadd.f32 0.0, %v482
    %v484 = vpop.f32.mrb[0].mxu0
    %485 = vmatprep.mubr.f32.mxu0 0.0
    %486 = vmatmul.mubr.f32.gmra.mrb[0].mxu0 %v406
    %v487 = vpop.f32.mrb[0].mxu0
    %v488 = vadd.f32 0.0, %v487
    %v489 = vpop.f32.mrb[0].mxu0
    %490 = vmatprep.mubr.f32.mxu0 0.0
    %491 = vmatmul.mubr.f32.gmra.mrb[0].mxu0 %v409
    %v492 = vpop.f32.mrb[0].mxu0
    %v493 = vadd.f32 0.0, %v492
    %v494 = vpop.f32.mrb[0].mxu0
    %495 = vdwg.mxu0
    %496 = vst [vmem:[#allocation2] sm:$0xff] %v478
    %497 = vst [vmem:[#allocation2 + $0x10] sm:$0xff] %v483
    %498 = vst [vmem:[#allocation2 + $0x20] sm:$0xff] %v488
    %499 = vst [vmem:[#allocation2 + $0x30] sm:$0xff] %v493
    %v500 = vld [vmem:[#allocation2] sm:$0xff]
    %v501 = vld [vmem:[#allocation2 + $0x8] sm:$0xff]
    %v502 = vld [vmem:[#allocation2 + $0x10] sm:$0xff]
    %v503 = vld [vmem:[#allocation2 + $0x18] sm:$0xff]
    %v504 = vld [vmem:[#allocation2 + $0x20] sm:$0xff]
    %v505 = vld [vmem:[#allocation2 + $0x28] sm:$0xff]
    %v506 = vld [vmem:[#allocation2 + $0x30] sm:$0xff]
    %v507 = vld [vmem:[#allocation2 + $0x38] sm:$0xff]
    %s508 = scalar_lea.vmem [#allocation8], 256
    %v509 = vld [vmem:[%s508] sm:$0xff]
    %v510 = vld [vmem:[%s508 + $0x8] sm:$0xff]
    %v511 = vld [vmem:[%s508 + $0x10] sm:$0xff]
    %v512 = vld [vmem:[%s508 + $0x18] sm:$0xff]
    %v513 = vld [vmem:[%s508 + $0x20] sm:$0xff]
    %v514 = vld [vmem:[%s508 + $0x28] sm:$0xff]
    %v515 = vld [vmem:[%s508 + $0x30] sm:$0xff]
    %v516 = vld [vmem:[%s508 + $0x38] sm:$0xff]
    %v517 = vld [vmem:[%s508 + $0x40] sm:$0xff]
    %v518 = vld [vmem:[%s508 + $0x48] sm:$0xff]
    %v519 = vld [vmem:[%s508 + $0x50] sm:$0xff]
    %v520 = vld [vmem:[%s508 + $0x58] sm:$0xff]
    %v521 = vld [vmem:[%s508 + $0x60] sm:$0xff]
    %v522 = vld [vmem:[%s508 + $0x68] sm:$0xff]
    %v523 = vld [vmem:[%s508 + $0x70] sm:$0xff]
    %v524 = vld [vmem:[%s508 + $0x78] sm:$0xff]
    %v525 = vld [vmem:[%s508 + $0x80] sm:$0xff]
    %v526 = vld [vmem:[%s508 + $0x88] sm:$0xff]
    %v527 = vld [vmem:[%s508 + $0x90] sm:$0xff]
    %v528 = vld [vmem:[%s508 + $0x98] sm:$0xff]
    %v529 = vld [vmem:[%s508 + $0xa0] sm:$0xff]
    %v530 = vld [vmem:[%s508 + $0xa8] sm:$0xff]
    %v531 = vld [vmem:[%s508 + $0xb0] sm:$0xff]
    %v532 = vld [vmem:[%s508 + $0xb8] sm:$0xff]
    %v533 = vld [vmem:[%s508 + $0xc0] sm:$0xff]
    %v534 = vld [vmem:[%s508 + $0xc8] sm:$0xff]
    %v535 = vld [vmem:[%s508 + $0xd0] sm:$0xff]
    %v536 = vld [vmem:[%s508 + $0xd8] sm:$0xff]
    %v537 = vld [vmem:[%s508 + $0xe0] sm:$0xff]
    %v538 = vld [vmem:[%s508 + $0xe8] sm:$0xff]
    %v539 = vld [vmem:[%s508 + $0xf0] sm:$0xff]
    %v540 = vld [vmem:[%s508 + $0xf8] sm:$0xff]
    %541 = vmatprep.subr.mxu0 0.0
    %542 = vmatpush1.msra.mxu0 %v509
    %543 = vmatprep.subr.mxu0 0.0
    %544 = vmatpush1.msra.mxu0 %v510
    %545 = vmatprep.subr.mxu0 0.0
    %546 = vmatpush1.msra.mxu0 %v511
    %547 = vmatprep.subr.mxu0 0.0
    %548 = vmatpush1.msra.mxu0 %v512
    %549 = vmatprep.subr.mxu0 0.0
    %550 = vmatpush1.msra.mxu0 %v513
    %551 = vmatprep.subr.mxu0 0.0
    %552 = vmatpush1.msra.mxu0 %v514
    %553 = vmatprep.subr.mxu0 0.0
    %554 = vmatpush1.msra.mxu0 %v515
    %555 = vmatprep.subr.mxu0 0.0
    %556 = vmatpush1.msra.mxu0 %v516
    %557 = vmatprep.subr.mxu0 0.0
    %558 = vmatpush1.msra.mxu0 %v517
    %559 = vmatprep.subr.mxu0 0.0
    %560 = vmatpush1.msra.mxu0 %v518
    %561 = vmatprep.subr.mxu0 0.0
    %562 = vmatpush1.msra.mxu0 %v519
    %563 = vmatprep.subr.mxu0 0.0
    %564 = vmatpush1.msra.mxu0 %v520
    %565 = vmatprep.subr.mxu0 0.0
    %566 = vmatpush1.msra.mxu0 %v521
    %567 = vmatprep.subr.mxu0 0.0
    %568 = vmatpush1.msra.mxu0 %v522
    %569 = vmatprep.subr.mxu0 0.0
    %570 = vmatpush1.msra.mxu0 %v523
    %571 = vmatprep.subr.mxu0 0.0
    %572 = vmatpush1.msra.mxu0 %v524
    %573 = vmatprep.subr.mxu0 0.0
    %574 = vmatpush1.msra.mxu0 %v525
    %575 = vmatprep.subr.mxu0 0.0
    %576 = vmatpush1.msra.mxu0 %v526
    %577 = vmatprep.subr.mxu0 0.0
    %578 = vmatpush1.msra.mxu0 %v527
    %579 = vmatprep.subr.mxu0 0.0
    %580 = vmatpush1.msra.mxu0 %v528
    %581 = vmatprep.subr.mxu0 0.0
    %582 = vmatpush1.msra.mxu0 %v529
    %583 = vmatprep.subr.mxu0 0.0
    %584 = vmatpush1.msra.mxu0 %v530
    %585 = vmatprep.subr.mxu0 0.0
    %586 = vmatpush1.msra.mxu0 %v531
    %587 = vmatprep.subr.mxu0 0.0
    %588 = vmatpush1.msra.mxu0 %v532
    %589 = vmatprep.subr.mxu0 0.0
    %590 = vmatpush1.msra.mxu0 %v533
    %591 = vmatprep.subr.mxu0 0.0
    %592 = vmatpush1.msra.mxu0 %v534
    %593 = vmatprep.subr.mxu0 0.0
    %594 = vmatpush1.msra.mxu0 %v535
    %595 = vmatprep.subr.mxu0 0.0
    %596 = vmatpush1.msra.mxu0 %v536
    %597 = vmatprep.subr.mxu0 0.0
    %598 = vmatpush1.msra.mxu0 %v537
    %599 = vmatprep.subr.mxu0 0.0
    %600 = vmatpush1.msra.mxu0 %v538
    %601 = vmatprep.subr.mxu0 0.0
    %602 = vmatpush1.msra.mxu0 %v539
    %603 = vmatprep.subr.mxu0 0.0
    %604 = vmatpush1.msra.mxu0 %v540
    %605 = vmatprep.mubr.f32.mxu0 %v501
    %606 = vmatmul.mubr.f32.gmra.mrb[0].mxu0 %v500
    %v607 = vpop.f32.mrb[0].mxu0
    %v608 = vadd.f32 0.0, %v607
    %v609 = vpop.f32.mrb[0].mxu0
    %610 = vmatprep.mubr.f32.mxu0 %v503
    %611 = vmatmul.mubr.f32.gmra.mrb[0].mxu0 %v502
    %v612 = vpop.f32.mrb[0].mxu0
    %v613 = vadd.f32 0.0, %v612
    %v614 = vpop.f32.mrb[0].mxu0
    %615 = vmatprep.mubr.f32.mxu0 %v505
    %616 = vmatmul.mubr.f32.gmra.mrb[0].mxu0 %v504
    %v617 = vpop.f32.mrb[0].mxu0
    %v618 = vadd.f32 0.0, %v617
    %v619 = vpop.f32.mrb[0].mxu0
    %620 = vmatprep.mubr.f32.mxu0 %v507
    %621 = vmatmul.mubr.f32.gmra.mrb[0].mxu0 %v506
    %v622 = vpop.f32.mrb[0].mxu0
    %v623 = vadd.f32 0.0, %v622
    %v624 = vpop.f32.mrb[0].mxu0
    %625 = vdwg.mxu0
    %v626 = vadd.f32 %v608, %v613
    %v627 = vadd.f32 %v626, %v618
    %v628 = vadd.f32 %v627, %v623
    %v629 = vrot.slane %v628, 4
    %v630 = vadd.f32 %v628, %v629
    %v631 = vrot.slane %v630, 2
    %v632 = vadd.f32 %v630, %v631
    %v633 = vrot.slane %v632, 1
    %v634 = vadd.f32 %v632, %v633
    %v635 = vmul.f32 %v634, 0.033333335
    %v636 = vmul.f32 %v608, %v608
    %v637 = vmul.f32 %v613, %v613
    %v638 = vmul.f32 %v618, %v618
    %v639 = vmul.f32 %v623, %v623
    %v640 = vadd.f32 %v636, %v637
    %v641 = vadd.f32 %v640, %v638
    %v642 = vadd.f32 %v641, %v639
    %v643 = vrot.slane %v642, 4
    %v644 = vadd.f32 %v642, %v643
    %v645 = vrot.slane %v644, 2
    %v646 = vadd.f32 %v644, %v645
    %v647 = vrot.slane %v646, 1
    %v648 = vadd.f32 %v646, %v647
    %v649 = vmul.f32 %v648, 0.033333335
    %v650 = vmul.f32 %v635, %v635
    %v651 = vsub.f32 %v649, %v650
    %v652 = vmax.f32 %v651, 0.0
    %s653 = scalar_lea.vmem %s4, 1
    %v654 = vld [vmem:[%s653] sm:$0x1]
    %v655 = vadd.f32 %v652, 1e-05
    %v656 = vrsqrt.pop %v655
    %v657 = vmul.f32 %v654, %v656
    %s658 = scalar_lea.vmem %s5, 1
    %v659 = vld [vmem:[%s658] sm:$0x1]
    %v660 = vmul.f32 %v635, %v657
    %v661 = vsub.f32 %v659, %v660
    %v663 = vlaneseq
    %v664 = vshrl.u32 %v663, 7
    %v665 = vsub.s32 0, %v664
    %v666 = vrot.slane %v657, %v665
    %v668 = vmul.f32 %v608, %v666
    %v669 = vmul.f32 %v613, %v666
    %v670 = vmul.f32 %v618, %v666
    %v671 = vmul.f32 %v623, %v666
    %v673 = vlaneseq
    %v674 = vshrl.u32 %v673, 7
    %v675 = vsub.s32 0, %v674
    %v676 = vrot.slane %v661, %v675
    %v678 = vadd.f32 %v668, %v676
    %v679 = vadd.f32 %v669, %v676
    %v680 = vadd.f32 %v670, %v676
    %v681 = vadd.f32 %v671, %v676
    %v682 = vmax.f32 %v678, 0.0
    %v683 = vmax.f32 %v679, 0.0
    %v684 = vmax.f32 %v680, 0.0
    %v685 = vmax.f32 %v681, 0.0
    %v686 = vmul.f32 %v682, %v78
    %v687 = vmul.f32 %v683, %v79
    %v688 = vmul.f32 %v684, %v80
    %v689 = vmul.f32 %v685, %v81
    %690 = vst [vmem:[#allocation2 + $0x8] sm:$0xff] %v686
    %691 = vst [vmem:[#allocation2 + $0x18] sm:$0xff] %v687
    %692 = vst [vmem:[#allocation2 + $0x28] sm:$0xff] %v688
    %693 = vst [vmem:[#allocation2 + $0x38] sm:$0xff] %v689
    %v694 = vld [vmem:[#allocation2 + $0x8] sm:$0xff]
    %v695 = vld [vmem:[#allocation2 + $0x18] sm:$0xff]
    %v696 = vld [vmem:[#allocation2 + $0x28] sm:$0xff]
    %v697 = vld [vmem:[#allocation2 + $0x38] sm:$0xff]
    %v698 = vld [vmem:[#allocation3] sm:$0xff]
    %v699 = vld [vmem:[#allocation3 + $0x8] sm:$0xff]
    %v700 = vld [vmem:[#allocation3 + $0x10] sm:$0xff]
    %v701 = vld [vmem:[#allocation3 + $0x18] sm:$0xff]
    %v703 = vsel %vm98, %v698, 0
    %v706 = vsel %vm98, %v699, 0
    %v709 = vsel %vm98, %v700, 0
    %v712 = vsel %vm98, %v701, 0
    %714 = vmatprep.subr.mxu0 0.0
    %715 = vmatpush1.msra.mxu0 %v694
    %716 = vmatprep.subr.mxu0 0.0
    %717 = vmatpush1.msra.mxu0 %v695
    %718 = vmatprep.subr.mxu0 0.0
    %719 = vmatpush1.msra.mxu0 %v696
    %720 = vmatprep.subr.mxu0 0.0
    %721 = vmatpush1.msra.mxu0 %v697
    %722 = vmatprep.subr.mxu0 0.0
    %723 = vmatpush1.msra.mxu0 0.0
    %724 = vmatprep.subr.mxu0 0.0
    %725 = vmatpush1.msra.mxu0 0.0
    %726 = vmatprep.subr.mxu0 0.0
    %727 = vmatpush1.msra.mxu0 0.0
    %728 = vmatprep.subr.mxu0 0.0
    %729 = vmatpush1.msra.mxu0 0.0
    %730 = vmatprep.subr.mxu0 0.0
    %731 = vmatpush1.msra.mxu0 0.0
    %732 = vmatprep.subr.mxu0 0.0
    %733 = vmatpush1.msra.mxu0 0.0
    %734 = vmatprep.subr.mxu0 0.0
    %735 = vmatpush1.msra.mxu0 0.0
    %736 = vmatprep.subr.mxu0 0.0
    %737 = vmatpush1.msra.mxu0 0.0
    %738 = vmatprep.subr.mxu0 0.0
    %739 = vmatpush1.msra.mxu0 0.0
    %740 = vmatprep.subr.mxu0 0.0
    %741 = vmatpush1.msra.mxu0 0.0
    %742 = vmatprep.subr.mxu0 0.0
    %743 = vmatpush1.msra.mxu0 0.0
    %744 = vmatprep.subr.mxu0 0.0
    %745 = vmatpush1.msra.mxu0 0.0
    %746 = vmatprep.subr.mxu0 0.0
    %747 = vmatpush1.msra.mxu0 0.0
    %748 = vmatprep.subr.mxu0 0.0
    %749 = vmatpush1.msra.mxu0 0.0
    %750 = vmatprep.subr.mxu0 0.0
    %751 = vmatpush1.msra.mxu0 0.0
    %752 = vmatprep.subr.mxu0 0.0
    %753 = vmatpush1.msra.mxu0 0.0
    %754 = vmatprep.subr.mxu0 0.0
    %755 = vmatpush1.msra.mxu0 0.0
    %756 = vmatprep.subr.mxu0 0.0
    %757 = vmatpush1.msra.mxu0 0.0
    %758 = vmatprep.subr.mxu0 0.0
    %759 = vmatpush1.msra.mxu0 0.0
    %760 = vmatprep.subr.mxu0 0.0
    %761 = vmatpush1.msra.mxu0 0.0
    %762 = vmatprep.subr.mxu0 0.0
    %763 = vmatpush1.msra.mxu0 0.0
    %764 = vmatprep.subr.mxu0 0.0
    %765 = vmatpush1.msra.mxu0 0.0
    %766 = vmatprep.subr.mxu0 0.0
    %767 = vmatpush1.msra.mxu0 0.0
    %768 = vmatprep.subr.mxu0 0.0
    %769 = vmatpush1.msra.mxu0 0.0
    %770 = vmatprep.subr.mxu0 0.0
    %771 = vmatpush1.msra.mxu0 0.0
    %772 = vmatprep.subr.mxu0 0.0
    %773 = vmatpush1.msra.mxu0 0.0
    %774 = vmatprep.subr.mxu0 0.0
    %775 = vmatpush1.msra.mxu0 0.0
    %776 = vmatprep.subr.mxu0 0.0
    %777 = vmatpush1.msra.mxu0 0.0
    %778 = vmatprep.mubr.f32.mxu0 0.0
    %779 = vmatmul.mubr.f32.gmra.mrb[0].mxu0 %v703
    %v780 = vpop.f32.mrb[0].mxu0
    %v781 = vadd.f32 0.0, %v780
    %v782 = vpop.f32.mrb[0].mxu0
    %783 = vmatprep.mubr.f32.mxu0 0.0
    %784 = vmatmul.mubr.f32.gmra.mrb[0].mxu0 %v706
    %v785 = vpop.f32.mrb[0].mxu0
    %v786 = vadd.f32 0.0, %v785
    %v787 = vpop.f32.mrb[0].mxu0
    %788 = vmatprep.mubr.f32.mxu0 0.0
    %789 = vmatmul.mubr.f32.gmra.mrb[0].mxu0 %v709
    %v790 = vpop.f32.mrb[0].mxu0
    %v791 = vadd.f32 0.0, %v790
    %v792 = vpop.f32.mrb[0].mxu0
    %793 = vmatprep.mubr.f32.mxu0 0.0
    %794 = vmatmul.mubr.f32.gmra.mrb[0].mxu0 %v712
    %v795 = vpop.f32.mrb[0].mxu0
    %v796 = vadd.f32 0.0, %v795
    %v797 = vpop.f32.mrb[0].mxu0
    %798 = vdwg.mxu0
    %799 = vst [vmem:[#allocation2] sm:$0xff] %v781
    %800 = vst [vmem:[#allocation2 + $0x10] sm:$0xff] %v786
    %801 = vst [vmem:[#allocation2 + $0x20] sm:$0xff] %v791
    %802 = vst [vmem:[#allocation2 + $0x30] sm:$0xff] %v796
    %v803 = vld [vmem:[#allocation2] sm:$0xff]
    %v804 = vld [vmem:[#allocation2 + $0x8] sm:$0xff]
    %v805 = vld [vmem:[#allocation2 + $0x10] sm:$0xff]
    %v806 = vld [vmem:[#allocation2 + $0x18] sm:$0xff]
    %v807 = vld [vmem:[#allocation2 + $0x20] sm:$0xff]
    %v808 = vld [vmem:[#allocation2 + $0x28] sm:$0xff]
    %v809 = vld [vmem:[#allocation2 + $0x30] sm:$0xff]
    %v810 = vld [vmem:[#allocation2 + $0x38] sm:$0xff]
    %s811 = scalar_lea.vmem [#allocation8], 512
    %v812 = vld [vmem:[%s811] sm:$0xff]
    %v813 = vld [vmem:[%s811 + $0x8] sm:$0xff]
    %v814 = vld [vmem:[%s811 + $0x10] sm:$0xff]
    %v815 = vld [vmem:[%s811 + $0x18] sm:$0xff]
    %v816 = vld [vmem:[%s811 + $0x20] sm:$0xff]
    %v817 = vld [vmem:[%s811 + $0x28] sm:$0xff]
    %v818 = vld [vmem:[%s811 + $0x30] sm:$0xff]
    %v819 = vld [vmem:[%s811 + $0x38] sm:$0xff]
    %v820 = vld [vmem:[%s811 + $0x40] sm:$0xff]
    %v821 = vld [vmem:[%s811 + $0x48] sm:$0xff]
    %v822 = vld [vmem:[%s811 + $0x50] sm:$0xff]
    %v823 = vld [vmem:[%s811 + $0x58] sm:$0xff]
    %v824 = vld [vmem:[%s811 + $0x60] sm:$0xff]
    %v825 = vld [vmem:[%s811 + $0x68] sm:$0xff]
    %v826 = vld [vmem:[%s811 + $0x70] sm:$0xff]
    %v827 = vld [vmem:[%s811 + $0x78] sm:$0xff]
    %v828 = vld [vmem:[%s811 + $0x80] sm:$0xff]
    %v829 = vld [vmem:[%s811 + $0x88] sm:$0xff]
    %v830 = vld [vmem:[%s811 + $0x90] sm:$0xff]
    %v831 = vld [vmem:[%s811 + $0x98] sm:$0xff]
    %v832 = vld [vmem:[%s811 + $0xa0] sm:$0xff]
    %v833 = vld [vmem:[%s811 + $0xa8] sm:$0xff]
    %v834 = vld [vmem:[%s811 + $0xb0] sm:$0xff]
    %v835 = vld [vmem:[%s811 + $0xb8] sm:$0xff]
    %v836 = vld [vmem:[%s811 + $0xc0] sm:$0xff]
    %v837 = vld [vmem:[%s811 + $0xc8] sm:$0xff]
    %v838 = vld [vmem:[%s811 + $0xd0] sm:$0xff]
    %v839 = vld [vmem:[%s811 + $0xd8] sm:$0xff]
    %v840 = vld [vmem:[%s811 + $0xe0] sm:$0xff]
    %v841 = vld [vmem:[%s811 + $0xe8] sm:$0xff]
    %v842 = vld [vmem:[%s811 + $0xf0] sm:$0xff]
    %v843 = vld [vmem:[%s811 + $0xf8] sm:$0xff]
    %v844 = vld [vmem:[%s3] sm:$0x1]
    %v846 = vlaneseq
    %v847 = vshrl.u32 %v846, 7
    %v848 = vsub.s32 0, %v847
    %v849 = vrot.slane %v844, %v848
    %851 = vmatprep.subr.mxu0 0.0
    %852 = vmatpush1.msra.mxu0 %v812
    %853 = vmatprep.subr.mxu0 0.0
    %854 = vmatpush1.msra.mxu0 %v813
    %855 = vmatprep.subr.mxu0 0.0
    %856 = vmatpush1.msra.mxu0 %v814
    %857 = vmatprep.subr.mxu0 0.0
    %858 = vmatpush1.msra.mxu0 %v815
    %859 = vmatprep.subr.mxu0 0.0
    %860 = vmatpush1.msra.mxu0 %v816
    %861 = vmatprep.subr.mxu0 0.0
    %862 = vmatpush1.msra.mxu0 %v817
    %863 = vmatprep.subr.mxu0 0.0
    %864 = vmatpush1.msra.mxu0 %v818
    %865 = vmatprep.subr.mxu0 0.0
    %866 = vmatpush1.msra.mxu0 %v819
    %867 = vmatprep.subr.mxu0 0.0
    %868 = vmatpush1.msra.mxu0 %v820
    %869 = vmatprep.subr.mxu0 0.0
    %870 = vmatpush1.msra.mxu0 %v821
    %871 = vmatprep.subr.mxu0 0.0
    %872 = vmatpush1.msra.mxu0 %v822
    %873 = vmatprep.subr.mxu0 0.0
    %874 = vmatpush1.msra.mxu0 %v823
    %875 = vmatprep.subr.mxu0 0.0
    %876 = vmatpush1.msra.mxu0 %v824
    %877 = vmatprep.subr.mxu0 0.0
    %878 = vmatpush1.msra.mxu0 %v825
    %879 = vmatprep.subr.mxu0 0.0
    %880 = vmatpush1.msra.mxu0 %v826
    %881 = vmatprep.subr.mxu0 0.0
    %882 = vmatpush1.msra.mxu0 %v827
    %883 = vmatprep.subr.mxu0 0.0
    %884 = vmatpush1.msra.mxu0 %v828
    %885 = vmatprep.subr.mxu0 0.0
    %886 = vmatpush1.msra.mxu0 %v829
    %887 = vmatprep.subr.mxu0 0.0
    %888 = vmatpush1.msra.mxu0 %v830
    %889 = vmatprep.subr.mxu0 0.0
    %890 = vmatpush1.msra.mxu0 %v831
    %891 = vmatprep.subr.mxu0 0.0
    %892 = vmatpush1.msra.mxu0 %v832
    %893 = vmatprep.subr.mxu0 0.0
    %894 = vmatpush1.msra.mxu0 %v833
    %895 = vmatprep.subr.mxu0 0.0
    %896 = vmatpush1.msra.mxu0 %v834
    %897 = vmatprep.subr.mxu0 0.0
    %898 = vmatpush1.msra.mxu0 %v835
    %899 = vmatprep.subr.mxu0 0.0
    %900 = vmatpush1.msra.mxu0 %v836
    %901 = vmatprep.subr.mxu0 0.0
    %902 = vmatpush1.msra.mxu0 %v837
    %903 = vmatprep.subr.mxu0 0.0
    %904 = vmatpush1.msra.mxu0 %v838
    %905 = vmatprep.subr.mxu0 0.0
    %906 = vmatpush1.msra.mxu0 %v839
    %907 = vmatprep.subr.mxu0 0.0
    %908 = vmatpush1.msra.mxu0 %v840
    %909 = vmatprep.subr.mxu0 0.0
    %910 = vmatpush1.msra.mxu0 %v841
    %911 = vmatprep.subr.mxu0 0.0
    %912 = vmatpush1.msra.mxu0 %v842
    %913 = vmatprep.subr.mxu0 0.0
    %914 = vmatpush1.msra.mxu0 %v843
    %915 = vmatprep.mubr.f32.mxu0 %v804
    %916 = vmatmul.mubr.f32.gmra.mrb[0].mxu0 %v803
    %v917 = vpop.f32.mrb[0].mxu0
    %v918 = vadd.f32 %v849, %v917
    %v919 = vpop.f32.mrb[0].mxu0
    %920 = vmatprep.mubr.f32.mxu0 %v806
    %921 = vmatmul.mubr.f32.gmra.mrb[0].mxu0 %v805
    %v922 = vpop.f32.mrb[0].mxu0
    %v923 = vadd.f32 %v849, %v922
    %v924 = vpop.f32.mrb[0].mxu0
    %925 = vmatprep.mubr.f32.mxu0 %v808
    %926 = vmatmul.mubr.f32.gmra.mrb[0].mxu0 %v807
    %v927 = vpop.f32.mrb[0].mxu0
    %v928 = vadd.f32 %v849, %v927
    %v929 = vpop.f32.mrb[0].mxu0
    %930 = vmatprep.mubr.f32.mxu0 %v810
    %931 = vmatmul.mubr.f32.gmra.mrb[0].mxu0 %v809
    %v932 = vpop.f32.mrb[0].mxu0
    %v933 = vadd.f32 %v849, %v932
    %v934 = vpop.f32.mrb[0].mxu0
    %935 = vdwg.mxu0
    %936 = vst [vmem:[#allocation9] sm:$0xff] %v918
    %937 = vst [vmem:[#allocation9 + $0x8] sm:$0xff] %v923
    %938 = vst [vmem:[#allocation9 + $0x10] sm:$0xff] %v928
    %939 = vst [vmem:[#allocation9 + $0x18] sm:$0xff] %v933
    // Predicated region
    $region38: #{tpu_custom_call.1} parent=1 // pred_check
      _
    $region39: #{tpu_custom_call.1} parent=1 // pred_check_branch
      %941 = sbr.rel (0) target = $region41
    $region40: #{tpu_custom_call.1} parent=1 // pred_region
      %s943 = ssub.s32 512, 512
      %944 = vsyncadd [#allocation5], %s943
      %s945 = sshll.u32 [#allocation9], 4
      %s946 = int_to_ptr.vmem [resolvable:$true] %s945
      %951 = dma.vmem_to_hbm [thread:$0]  %s946, 512, %s6, [#allocation5], 128, 128, 8
    $region41: #{tpu_custom_call.1} parent=1 // pred_fallthru
      _
    // Predicated region
    $region42: #{tpu_custom_call.1} parent=1 // pred_check
      _
    $region43: #{tpu_custom_call.1} parent=1 // pred_check_branch
      %953 = sbr.rel (0) target = $region45
    $region44: #{tpu_custom_call.1} parent=1 // pred_region
      %954 = dma.done [#allocation5], 512
    $region45: #{tpu_custom_call.1} parent=1 // pred_fallthru
      _
    %955 = vsyncpa [#allocation4], 1
    %956 = vsyncpa [#allocation7], 1
    %957 = vsyncpa [#allocation5], 1

</llo_original>
